<compile_context>
chip_gen: v7x
topology: tpu7x:2x2x1
jax: 0.10.0
libtpu: 0.0.40
codegen_flags: <defaults>
</compile_context>

<pallas_src>
import jax
import jax.numpy as jnp
from jax.experimental import pallas as pl
from jax.experimental.pallas import tpu as pltpu

FEATURE_DIM = 1000   # output width of the feature extractor, as nn.Linear(1000, ...) requires
LANE = 128
SUBLANE = 8


def _round_up(x, m):
    return (x + m - 1) // m * m


def classifier_kernel(x_ref, w1_ref, b1_ref, w2_ref, b2_ref, o_ref, acc_ref):
    """Fused, tiled forward: feat = x @ W1 + b1 ; logits = feat @ W2 + b2.

    Grid = (batch_blocks, k_blocks).  The F_in contraction streams W1 tiles
    along the last ("arbitrary") grid axis into a f32 VMEM accumulator; the
    small second matmul and both bias adds run only on the final K step.
    """
    k = pl.program_id(1)

    @pl.when(k == 0)
    def _():
        acc_ref[...] = jnp.zeros_like(acc_ref)

    # bf16 x bf16 on the MXU with f32 accumulation.
    acc_ref[...] += jnp.dot(x_ref[...], w1_ref[...],
                            preferred_element_type=jnp.float32)

    @pl.when(k == pl.num_programs(1) - 1)
    def _():
        feat = acc_ref[...] + b1_ref[...]                          # f32 [tb, HID_PAD]
        logits = jnp.dot(feat.astype(w2_ref.dtype), w2_ref[...],
                         preferred_element_type=jnp.float32)       # f32 [tb, C_PAD]
        o_ref[...] = (logits + b2_ref[...]).astype(o_ref.dtype)


def classifier_forward(x_nchw, w_feat, b_feat, w_cls, b_cls, *, tk=512, tb=None):
    """x_nchw: [B, C, H, W] float32.  Returns logits [B, class_num] float32."""
    B = x_nchw.shape[0]
    x_flat = x_nchw.reshape(B, -1)                  # glue: same order as torch .view(B, -1)
    f_in = x_flat.shape[1]
    hid = w_feat.shape[1]                           # 1000
    class_num = w_cls.shape[1]

    # Lane/MXU alignment: hidden 1000 -> 1024, class_num -> 128, F_in -> multiple of tk.
    hid_p = _round_up(hid, LANE)
    c_p = _round_up(class_num, LANE)
    tk = min(tk, _round_up(f_in, LANE))
    f_p = _round_up(f_in, tk)
    if tb is None:
        tb = min(128, _round_up(B, SUBLANE))
    b_p = _round_up(B, tb)

    # Zero-pad and cast matmul operands to bf16 (biases / output stay f32).
    xp = jnp.zeros((b_p, f_p), jnp.bfloat16).at[:B, :f_in].set(x_flat.astype(jnp.bfloat16))
    w1p = jnp.zeros((f_p, hid_p), jnp.bfloat16).at[:f_in, :hid].set(w_feat.astype(jnp.bfloat16))
    b1p = jnp.zeros((1, hid_p), jnp.float32).at[:, :hid].set(b_feat.astype(jnp.float32))
    w2p = jnp.zeros((hid_p, c_p), jnp.bfloat16).at[:hid, :class_num].set(w_cls.astype(jnp.bfloat16))
    b2p = jnp.zeros((1, c_p), jnp.float32).at[:, :class_num].set(b_cls.astype(jnp.float32))

    grid = (b_p // tb, f_p // tk)

    cost = pl.CostEstimate(
        flops=2 * B * f_in * hid + 2 * B * hid * class_num,
        transcendentals=0,
        bytes_accessed=(x_flat.size * 2 + w_feat.size * 2 + w_cls.size * 2
                        + b_feat.size * 4 + b_cls.size * 4 + B * class_num * 4),
    )

    out = pl.pallas_call(
        classifier_kernel,
        out_shape=jax.ShapeDtypeStruct((b_p, c_p), jnp.float32),
        grid_spec=pltpu.PrefetchScalarGridSpec(
            num_scalar_prefetch=0,
            grid=grid,
            in_specs=[
                pl.BlockSpec((tb, tk), lambda i, k: (i, k)),      # x tile
                pl.BlockSpec((tk, hid_p), lambda i, k: (k, 0)),   # W1 tile, streamed over K
                pl.BlockSpec((1, hid_p), lambda i, k: (0, 0)),    # b1 (grid-invariant)
                pl.BlockSpec((hid_p, c_p), lambda i, k: (0, 0)),  # W2 (grid-invariant)
                pl.BlockSpec((1, c_p), lambda i, k: (0, 0)),      # b2 (grid-invariant)
            ],
            out_specs=pl.BlockSpec((tb, c_p), lambda i, k: (i, 0)),
            scratch_shapes=[pltpu.VMEM((tb, hid_p), jnp.float32)],  # feature accumulator
        ),
        compiler_params=pltpu.CompilerParams(
            dimension_semantics=("parallel", "arbitrary"),   # batch -> megacore, K -> reduction
            vmem_limit_bytes=32 * 1024 * 1024,               # safe on v5e/v6e/v7x; tiles ~3 MiB
        ),
        cost_estimate=cost,
    )(xp, w1p, b1p, w2p, b2p)

    return out[:B, :class_num]


def init_params(key, in_features, class_num):
    """Deterministic nn.Linear-style init (uniform(-1/sqrt(fan_in), 1/sqrt(fan_in)))."""
    k1, k2, k3, k4 = jax.random.split(key, 4)
    lim1 = 1.0 / (in_features ** 0.5)
    lim2 = 1.0 / (FEATURE_DIM ** 0.5)
    # stored as [in, out] so the kernel does x @ W (== torch's x @ W.T with W [out, in])
    w_feat = jax.random.uniform(k1, (in_features, FEATURE_DIM), jnp.float32, -lim1, lim1)
    b_feat = jax.random.uniform(k2, (1, FEATURE_DIM), jnp.float32, -lim1, lim1)
    w_cls = jax.random.uniform(k3, (FEATURE_DIM, class_num), jnp.float32, -lim2, lim2)
    b_cls = jax.random.uniform(k4, (1, class_num), jnp.float32, -lim2, lim2)
    return w_feat, b_feat, w_cls, b_cls


if __name__ == "__main__":
    key = jax.random.PRNGKey(0)
    kx, kp = jax.random.split(key)

    # small shapes consistent with an NCHW image-classifier input
    B, C, H, W = 2, 4, 16, 16
    class_num = 10
    x = jax.random.normal(kx, (B, C, H, W), jnp.float32)

    w_feat, b_feat, w_cls, b_cls = init_params(kp, C * H * W, class_num)

    logits = classifier_forward(x, w_feat, b_feat, w_cls, b_cls)
    jax.block_until_ready(logits)

    # Reference computed with the same bf16-inputs / f32-accumulation recipe.
    xb = x.reshape(B, -1).astype(jnp.bfloat16)
    feat_ref = jnp.dot(xb, w_feat.astype(jnp.bfloat16),
                       preferred_element_type=jnp.float32) + b_feat
    ref = jnp.dot(feat_ref.astype(jnp.bfloat16), w_cls.astype(jnp.bfloat16),
                  preferred_element_type=jnp.float32) + b_cls

    assert logits.shape == (B, class_num)
    assert jnp.allclose(logits, ref, atol=1e-2, rtol=1e-2), \
        float(jnp.max(jnp.abs(logits - ref)))

    print("KERNEL_OK")
</pallas_src>

<mosaic_0001>
module attributes {stable_mosaic.version = 11 : i64} {
  func.func @classifier_kernel(%arg0: i32, %arg1: i32, %arg2: memref<8x512xbf16, #tpu.memory_space<vmem>>, %arg3: memref<512x1024xbf16, #tpu.memory_space<vmem>>, %arg4: memref<1x1024xf32, #tpu.memory_space<vmem>>, %arg5: memref<1024x128xbf16, #tpu.memory_space<vmem>>, %arg6: memref<1x128xf32, #tpu.memory_space<vmem>>, %arg7: memref<8x128xf32, #tpu.memory_space<vmem>>, %arg8: memref<8x1024xf32, #tpu.memory_space<vmem>>) attributes {dimension_semantics = [#tpu.dimension_semantics<parallel>, #tpu.dimension_semantics<arbitrary>], iteration_bounds = array<i64: 1, 2>, scalar_prefetch = 0 : i64, scratch_operands = 1 : i64, tpu.core_type = #tpu.core_type<tc>, window_params = [{transform_indices = @transform_0, window_bounds = array<i64: 8, 512>}, {transform_indices = @transform_1, window_bounds = array<i64: 512, 1024>}, {pipeline_mode = #tpu.pipeline_mode<synchronous>, transform_indices = @transform_2, window_bounds = array<i64: 1, 1024>}, {pipeline_mode = #tpu.pipeline_mode<synchronous>, transform_indices = @transform_3, window_bounds = array<i64: 1024, 128>}, {pipeline_mode = #tpu.pipeline_mode<synchronous>, transform_indices = @transform_4, window_bounds = array<i64: 1, 128>}, {transform_indices = @transform_5, window_bounds = array<i64: 8, 128>}]} {
    %c0_i32 = arith.constant 0 : i32
    %0 = arith.cmpi eq, %arg1, %c0_i32 : i32
    %1 = arith.extui %0 : i1 to i32
    %c0_i32_0 = arith.constant 0 : i32
    %2 = arith.cmpi ne, %1, %c0_i32_0 : i32
    scf.if %2 {
      %cst_9 = arith.constant 0.000000e+00 : f32
      %12 = vector.broadcast %cst_9 : f32 to vector<8x1024xf32>
      %c0_10 = arith.constant 0 : index
      %c0_11 = arith.constant 0 : index
      %13 = vector.load %arg8[%c0_10, %c0_11] : memref<8x1024xf32, #tpu.memory_space<vmem>>, vector<8x1024xf32>
      tpu.vector_store %arg8[%c0_10, %c0_11], %12 {strides = array<i32>} : memref<8x1024xf32, #tpu.memory_space<vmem>>, vector<8x1024xf32>,
    } else {
    }
    %c0 = arith.constant 0 : index
    %c0_1 = arith.constant 0 : index
    %3 = vector.load %arg8[%c0, %c0_1] : memref<8x1024xf32, #tpu.memory_space<vmem>>, vector<8x1024xf32>
    %c0_2 = arith.constant 0 : index
    %c0_3 = arith.constant 0 : index
    %4 = vector.load %arg2[%c0_2, %c0_3] : memref<8x512xbf16, #tpu.memory_space<vmem>>, vector<8x512xbf16>
    %c0_4 = arith.constant 0 : index
    %c0_5 = arith.constant 0 : index
    %5 = vector.load %arg3[%c0_4, %c0_5] : memref<512x1024xbf16, #tpu.memory_space<vmem>>, vector<512x1024xbf16>
    %cst = arith.constant dense<0.000000e+00> : vector<8x1024xf32>
    %6 = tpu.matmul %4, %5, %cst {dimension_numbers = #tpu.dot_dimension_numbers<[1], [0], [0], [1], [0, 0, 1, 1], [], []>} : vector<8x512xbf16>, vector<512x1024xbf16>, vector<8x1024xf32> -> vector<8x1024xf32>
    %7 = arith.addf %3, %6 : vector<8x1024xf32>
    %c0_6 = arith.constant 0 : index
    %c0_7 = arith.constant 0 : index
    %8 = vector.load %arg8[%c0_6, %c0_7] : memref<8x1024xf32, #tpu.memory_space<vmem>>, vector<8x1024xf32>
    tpu.vector_store %arg8[%c0_6, %c0_7], %7 {strides = array<i32>} : memref<8x1024xf32, #tpu.memory_space<vmem>>, vector<8x1024xf32>,
    %c1_i32 = arith.constant 1 : i32
    %9 = arith.cmpi eq, %arg1, %c1_i32 : i32
    %10 = arith.extui %9 : i1 to i32
    %c0_i32_8 = arith.constant 0 : i32
    %11 = arith.cmpi ne, %10, %c0_i32_8 : i32
    scf.if %11 {
      %c0_9 = arith.constant 0 : index
      %c0_10 = arith.constant 0 : index
      %12 = vector.load %arg8[%c0_9, %c0_10] : memref<8x1024xf32, #tpu.memory_space<vmem>>, vector<8x1024xf32>
      %c0_11 = arith.constant 0 : index
      %c0_12 = arith.constant 0 : index
      %13 = vector.load %arg4[%c0_11, %c0_12] : memref<1x1024xf32, #tpu.memory_space<vmem>>, vector<1x1024xf32>
      %14 = vector.broadcast %13 : vector<1x1024xf32> to vector<8x1024xf32>
      %15 = arith.addf %12, %14 : vector<8x1024xf32>
      %16 = arith.truncf %15 : vector<8x1024xf32> to vector<8x1024xbf16>
      %c0_13 = arith.constant 0 : index
      %c0_14 = arith.constant 0 : index
      %17 = vector.load %arg5[%c0_13, %c0_14] : memref<1024x128xbf16, #tpu.memory_space<vmem>>, vector<1024x128xbf16>
      %cst_15 = arith.constant dense<0.000000e+00> : vector<8x128xf32>
      %18 = tpu.matmul %16, %17, %cst_15 {dimension_numbers = #tpu.dot_dimension_numbers<[1], [0], [0], [1], [0, 0, 1, 1], [], []>} : vector<8x1024xbf16>, vector<1024x128xbf16>, vector<8x128xf32> -> vector<8x128xf32>
      %c0_16 = arith.constant 0 : index
      %c0_17 = arith.constant 0 : index
      %19 = vector.load %arg6[%c0_16, %c0_17] : memref<1x128xf32, #tpu.memory_space<vmem>>, vector<1x128xf32>
      %20 = vector.broadcast %19 : vector<1x128xf32> to vector<8x128xf32>
      %21 = arith.addf %18, %20 : vector<8x128xf32>
      %c0_18 = arith.constant 0 : index
      %c0_19 = arith.constant 0 : index
      %22 = vector.load %arg7[%c0_18, %c0_19] : memref<8x128xf32, #tpu.memory_space<vmem>>, vector<8x128xf32>
      tpu.vector_store %arg7[%c0_18, %c0_19], %21 {strides = array<i32>} : memref<8x128xf32, #tpu.memory_space<vmem>>, vector<8x128xf32>,
    } else {
    }
    return
  }
  func.func @transform_0(%arg0: i32, %arg1: i32) -> (i32, i32) {
    %c0_i32 = arith.constant 0 : i32
    return %arg0, %arg1 : i32, i32
  }
  func.func @transform_1(%arg0: i32, %arg1: i32) -> (i32, i32) {
    %c0_i32 = arith.constant 0 : i32
    %c0_i32_0 = arith.constant 0 : i32
    return %arg1, %c0_i32 : i32, i32
  }
  func.func @transform_2(%arg0: i32, %arg1: i32) -> (i32, i32) {
    %c0_i32 = arith.constant 0 : i32
    %c0_i32_0 = arith.constant 0 : i32
    %c0_i32_1 = arith.constant 0 : i32
    return %c0_i32, %c0_i32_0 : i32, i32
  }
  func.func @transform_3(%arg0: i32, %arg1: i32) -> (i32, i32) {
    %c0_i32 = arith.constant 0 : i32
    %c0_i32_0 = arith.constant 0 : i32
    %c0_i32_1 = arith.constant 0 : i32
    return %c0_i32, %c0_i32_0 : i32, i32
  }
  func.func @transform_4(%arg0: i32, %arg1: i32) -> (i32, i32) {
    %c0_i32 = arith.constant 0 : i32
    %c0_i32_0 = arith.constant 0 : i32
    %c0_i32_1 = arith.constant 0 : i32
    return %c0_i32, %c0_i32_0 : i32, i32
  }
  func.func @transform_5(%arg0: i32, %arg1: i32) -> (i32, i32) {
    %c0_i32 = arith.constant 0 : i32
    %c0_i32_0 = arith.constant 0 : i32
    return %arg0, %c0_i32 : i32, i32
  }
}

</mosaic_0001>

<llo_original>
// kernel: tpu_custom_call.1
$region0: #{tpu_custom_call.1}
  #allocation0 [shape = 'u32[]', space=smem, size = 0x4, offset = 0x4, fixed_abs, tag = 'smem constant byte address 0x4 - core index']
  #allocation1 [shape = 'u32[144,128]{1,0:T(1,128)}', space=vmem, size = 0x12000, scoped, tag = 'internal scratch']
  #allocation2 [shape = 'f32[8,1024]{1,0:T(8,128)}', space=vmem, size = 0x8000, scoped, tag = 'scratch operand']
  %s0 = inlined_call_operand.hbm [shape: bf16[8,1024], index: 0, kind: input, shape index: {}]
  %s1 = inlined_call_operand.hbm [shape: bf16[1024,1024], index: 1, kind: input, shape index: {}]
  %s2 = inlined_call_operand.hbm [shape: f32[1,1024], index: 2, kind: input, shape index: {}]
  %s3 = inlined_call_operand.hbm [shape: bf16[1024,128], index: 3, kind: input, shape index: {}]
  %s4 = inlined_call_operand.hbm [shape: f32[1,128], index: 4, kind: input, shape index: {}]
  %s5 = inlined_call_operand.hbm [shape: f32[8,128], index: 5, kind: output, shape index: {}]
  %s6 = sld [smem:[#allocation0]]
  $region81: #{tpu_custom_call.1} parent=0
    _
  %s8 = ssub.s32 1, %s6
  %s9 = scalar_select 0, %s8, %s6
  $region1: #{tpu_custom_call.1} parent=0
    #allocation3 [shape = 'u8[16384]{0}', space=vmem, size = 0x4000, scoped, tag = 'input window, operand 0']
    #allocation4 [shape = 's32[2]{0}', space=sflag, size = 0x8, scoped, tag = 'scoped memory for tpu_custom_call.1']
    #allocation5 [shape = 's32[2]{0}', space=sflag, size = 0x8, scoped, tag = 'scoped memory for tpu_custom_call.1']
    #allocation6 [shape = 'u8[2097152]{0}', space=vmem, size = 0x200000, scoped, tag = 'input window, operand 1']
    #allocation7 [shape = 's32[2]{0}', space=sflag, size = 0x8, scoped, tag = 'scoped memory for tpu_custom_call.1']
    #allocation8 [shape = 'u8[4096]{0}', space=vmem, size = 0x1000, scoped, tag = 'input window, operand 2, single buffered']
    #allocation9 [shape = 'u8[262144]{0}', space=vmem, size = 0x40000, scoped, tag = 'input window, operand 3, single buffered']
    #allocation10 [shape = 's32[1]{0}', space=sflag, size = 0x4, scoped, tag = 'scoped memory for tpu_custom_call.1']
    #allocation11 [shape = 'u8[512]{0}', space=vmem, size = 0x400, scoped, tag = 'input window, operand 4, single buffered']
    #allocation12 [shape = 'u8[4096]{0}', space=vmem, size = 0x1000, scoped, tag = 'output window, operand 0, single buffered']
    %10 = vsyncpa [#allocation4], 0
    %s11 = scalar_lea.sflag [#allocation4], 1
    %12 = vsyncpa %s11, 0
    %13 = vsyncpa [#allocation7], 0
    %s14 = scalar_lea.sflag [#allocation7], 1
    %15 = vsyncpa %s14, 0
    %16 = vsyncpa [#allocation10], 0
    %17 = vsyncpa [#allocation5], 0
    loop: start=0, step=1, limit=4
    $region2: #{tpu_custom_call.1} parent=1 // loop_pre_header
      _
    $region3: #{tpu_custom_call.1} parent=1 // loop_header
      %s19 = sphi 0, %s23
      %p20 = scmp.ge.s32.totalorder %s19, 4
      %s26 = sphi 0, %s38
      %s27 = sphi 0, %s34
      %s28 = sphi 0, %s26
      %s29 = sphi 0, %s27
      %s30 = sphi 0, %s28
      %s31 = sphi 0, %s29
      %s43 = sphi 0, %s45
      %s46 = sphi 0, %s43
      %s47 = sphi 0, %s46
      %s63 = sphi 0, %s47
      %s69 = sphi 0, %s71
      %s72 = sphi 0, %s69
      %s73 = sphi 0, %s72
      %s89 = sphi 0, %s73
      %s93 = sphi 0, %s93
      %s95 = sphi 0, %s93
      %s96 = sphi 0, %s95
      %s110 = sphi 0, %s96
      %s114 = sphi 0, %s114
      %s116 = sphi 0, %s114
      %s117 = sphi 0, %s116
      %s131 = sphi 0, %s117
      %s135 = sphi 0, %s135
      %s137 = sphi 0, %s135
      %s138 = sphi 0, %s137
      %s152 = sphi 0, %s138
      %s158 = sphi 0, %s160
      %s161 = sphi 0, %s158
      %s162 = sphi 0, %s161
      %s178 = sphi 0, %s162
    $region4: #{tpu_custom_call.1} parent=1 // loop_header_branch
      %22 = sbr.rel (%p20) target = $region8
    $region5: #{tpu_custom_call.1} parent=1 // loop_body
      %s24 = ssub.s32 %s19, 1
      %s25 = ssub.s32 %s19, 2
      %s32 = sadd.s32 1, %s27
      %p33 = scmp.ge.s32.totalorder %s32, 2
      %s34 = scalar_select %p33, 0, %s32
      %s35 = sadd.s32 1, %s26
      %s36 = scalar_select %p33, %s35, %s26
      %p37 = scmp.ge.s32.totalorder %s36, 1
      %s38 = scalar_select %p37, 0, %s36
      %s39 = ssub.s32 %s26, %s38
      %s40 = ssub.s32 %s27, %s34
      %s41 = sor.u32 %s39, %s40
      %p42 = scmp.eq.s32.totalorder %s41, 0
      %s44 = sadd.s32 %s43, 1
      %s45 = scalar_select %p42, %s43, %s44
      %p48 = pneg %p42
      %p49 = scmp.eq.s32.totalorder %s19, 1
      %p50 = por %p48, %p49
      %p51 = scmp.ne.s32.totalorder %s43, %s46
      %p52 = scmp.eq.s32.totalorder %s19, 0
      %p53 = por %p51, %p52
      %p54 = scmp.ne.s32.totalorder %s43, %s46
      %p55 = scmp.eq.s32.totalorder %s24, 1
      %p56 = por %p54, %p55
      %p57 = scmp.ne.s32.totalorder %s46, %s47
      %p58 = scmp.eq.s32.totalorder %s24, 0
      %p59 = por %p57, %p58
      %p60 = scmp.ne.s32.totalorder %s46, %s47
      %p61 = scmp.eq.s32.totalorder %s25, 1
      %p62 = por %p60, %p61
      %p64 = scmp.ne.s32.totalorder %s47, %s63
      %p65 = scmp.eq.s32.totalorder %s25, 0
      %p66 = por %p64, %p65
      %s67 = ssub.s32 %s27, %s34
      %p68 = scmp.eq.s32.totalorder %s67, 0
      %s70 = sadd.s32 %s69, 1
      %s71 = scalar_select %p68, %s69, %s70
      %p74 = pneg %p68
      %p75 = scmp.eq.s32.totalorder %s19, 1
      %p76 = por %p74, %p75
      %p77 = scmp.ne.s32.totalorder %s69, %s72
      %p78 = scmp.eq.s32.totalorder %s19, 0
      %p79 = por %p77, %p78
      %p80 = scmp.ne.s32.totalorder %s69, %s72
      %p81 = scmp.eq.s32.totalorder %s24, 1
      %p82 = por %p80, %p81
      %p83 = scmp.ne.s32.totalorder %s72, %s73
      %p84 = scmp.eq.s32.totalorder %s24, 0
      %p85 = por %p83, %p84
      %p86 = scmp.ne.s32.totalorder %s72, %s73
      %p87 = scmp.eq.s32.totalorder %s25, 1
      %p88 = por %p86, %p87
      %p90 = scmp.ne.s32.totalorder %s73, %s89
      %p91 = scmp.eq.s32.totalorder %s25, 0
      %p92 = por %p90, %p91
      %s94 = sadd.s32 %s93, 1
      %p97 = scmp.eq.s32.totalorder %s19, 1
      %p98 = scmp.ne.s32.totalorder %s93, %s95
      %p99 = scmp.eq.s32.totalorder %s19, 0
      %p100 = por %p98, %p99
      %p101 = scmp.ne.s32.totalorder %s93, %s95
      %p102 = scmp.eq.s32.totalorder %s24, 1
      %p103 = por %p101, %p102
      %p104 = scmp.ne.s32.totalorder %s95, %s96
      %p105 = scmp.eq.s32.totalorder %s24, 0
      %p106 = por %p104, %p105
      %p107 = scmp.ne.s32.totalorder %s95, %s96
      %p108 = scmp.eq.s32.totalorder %s25, 1
      %p109 = por %p107, %p108
      %p111 = scmp.ne.s32.totalorder %s96, %s110
      %p112 = scmp.eq.s32.totalorder %s25, 0
      %p113 = por %p111, %p112
      %s115 = sadd.s32 %s114, 1
      %p118 = scmp.eq.s32.totalorder %s19, 1
      %p119 = scmp.ne.s32.totalorder %s114, %s116
      %p120 = scmp.eq.s32.totalorder %s19, 0
      %p121 = por %p119, %p120
      %p122 = scmp.ne.s32.totalorder %s114, %s116
      %p123 = scmp.eq.s32.totalorder %s24, 1
      %p124 = por %p122, %p123
      %p125 = scmp.ne.s32.totalorder %s116, %s117
      %p126 = scmp.eq.s32.totalorder %s24, 0
      %p127 = por %p125, %p126
      %p128 = scmp.ne.s32.totalorder %s116, %s117
      %p129 = scmp.eq.s32.totalorder %s25, 1
      %p130 = por %p128, %p129
      %p132 = scmp.ne.s32.totalorder %s117, %s131
      %p133 = scmp.eq.s32.totalorder %s25, 0
      %p134 = por %p132, %p133
      %s136 = sadd.s32 %s135, 1
      %p139 = scmp.eq.s32.totalorder %s19, 1
      %p140 = scmp.ne.s32.totalorder %s135, %s137
      %p141 = scmp.eq.s32.totalorder %s19, 0
      %p142 = por %p140, %p141
      %p143 = scmp.ne.s32.totalorder %s135, %s137
      %p144 = scmp.eq.s32.totalorder %s24, 1
      %p145 = por %p143, %p144
      %p146 = scmp.ne.s32.totalorder %s137, %s138
      %p147 = scmp.eq.s32.totalorder %s24, 0
      %p148 = por %p146, %p147
      %p149 = scmp.ne.s32.totalorder %s137, %s138
      %p150 = scmp.eq.s32.totalorder %s25, 1
      %p151 = por %p149, %p150
      %p153 = scmp.ne.s32.totalorder %s138, %s152
      %p154 = scmp.eq.s32.totalorder %s25, 0
      %p155 = por %p153, %p154
      %s156 = ssub.s32 %s26, %s38
      %p157 = scmp.eq.s32.totalorder %s156, 0
      %s159 = sadd.s32 %s158, 1
      %s160 = scalar_select %p157, %s158, %s159
      %p163 = pneg %p157
      %p164 = scmp.eq.s32.totalorder %s19, 1
      %p165 = por %p163, %p164
      %p166 = scmp.ne.s32.totalorder %s158, %s161
      %p167 = scmp.eq.s32.totalorder %s19, 0
      %p168 = por %p166, %p167
      %p169 = scmp.ne.s32.totalorder %s158, %s161
      %p170 = scmp.eq.s32.totalorder %s24, 1
      %p171 = por %p169, %p170
      %p172 = scmp.ne.s32.totalorder %s161, %s162
      %p173 = scmp.eq.s32.totalorder %s24, 0
      %p174 = por %p172, %p173
      %p175 = scmp.ne.s32.totalorder %s161, %s162
      %p176 = scmp.eq.s32.totalorder %s25, 1
      %p177 = por %p175, %p176
      %p179 = scmp.ne.s32.totalorder %s162, %s178
      %p180 = scmp.eq.s32.totalorder %s25, 0
      %p181 = por %p179, %p180
      %p182 = scmp.le.s32.totalorder 1, %s19
      %p183 = scmp.lt.s32.totalorder %s19, 3
      %p184 = pnand %p182, %p183
      %p185 = pneg %p184
      // Predicated region
      $region9: #{tpu_custom_call.1} parent=5 // pred_check
        _
      $region10: #{tpu_custom_call.1} parent=5 // pred_check_branch
        %187 = sbr.rel (%p184) target = $region12
      $region11: #{tpu_custom_call.1} parent=5 // pred_region
        %s188 = ssub.s32 %s19, 1
        // Predicated region
        $region13: #{tpu_custom_call.1} parent=11 // pred_check
          %p189 = pneg %p106
        $region14: #{tpu_custom_call.1} parent=11 // pred_check_branch
          %191 = sbr.rel (%p189) target = $region16
        $region15: #{tpu_custom_call.1} parent=11 // pred_region
          %s193 = ssub.s32 128, 128
          %194 = vsyncadd [#allocation7], %s193
          %s196 = sshll.u32 [#allocation8], 4
          %s197 = int_to_ptr.vmem [resolvable:$true] %s196
          %199 = dma.hbm_to_vmem [thread:$0]  %s2, 128, %s197, [#allocation7]
        $region16: #{tpu_custom_call.1} parent=11 // pred_fallthru
          _
        // Predicated region
        $region17: #{tpu_custom_call.1} parent=11 // pred_check
          %p200 = pneg %p127
        $region18: #{tpu_custom_call.1} parent=11 // pred_check_branch
          %202 = sbr.rel (%p200) target = $region20
        $region19: #{tpu_custom_call.1} parent=11 // pred_region
          %s204 = ssub.s32 8192, 8192
          %205 = vsyncadd [#allocation10], %s204
          %s206 = sshll.u32 [#allocation9], 4
          %s207 = int_to_ptr.vmem [resolvable:$true] %s206
          %212 = dma.hbm_to_vmem [thread:$0]  %s3, 8192, %s207, [#allocation10], 64, 64, 4
        $region20: #{tpu_custom_call.1} parent=11 // pred_fallthru
          _
        // Predicated region
        $region21: #{tpu_custom_call.1} parent=11 // pred_check
          %p213 = pneg %p148
        $region22: #{tpu_custom_call.1} parent=11 // pred_check_branch
          %215 = sbr.rel (%p213) target = $region24
        $region23: #{tpu_custom_call.1} parent=11 // pred_region
          %s217 = ssub.s32 16, 16
          %218 = vsyncadd [#allocation10], %s217
          %s220 = sshll.u32 [#allocation11], 4
          %s221 = int_to_ptr.vmem [resolvable:$true] %s220
          %223 = dma.hbm_to_vmem [thread:$0]  %s4, 16, %s221, [#allocation10]
        $region24: #{tpu_custom_call.1} parent=11 // pred_fallthru
          _
      $region12: #{tpu_custom_call.1} parent=5 // pred_fallthru
        _
      %p224 = scmp.lt.s32.totalorder %s19, 2
      // Predicated region
      $region25: #{tpu_custom_call.1} parent=5 // pred_check
        %p225 = pneg %p224
      $region26: #{tpu_custom_call.1} parent=5 // pred_check_branch
        %227 = sbr.rel (%p225) target = $region28
      $region27: #{tpu_custom_call.1} parent=5 // pred_region
        // Predicated region
        $region29: #{tpu_custom_call.1} parent=27 // pred_check
          %p228 = pneg %p53
        $region30: #{tpu_custom_call.1} parent=27 // pred_check_branch
          %230 = sbr.rel (%p228) target = $region32
        $region31: #{tpu_custom_call.1} parent=27 // pred_region
          %s231 = sand.u32 %s43, 1
          %s232 = scalar_lea.sflag [#allocation4], %s231
          %s233 = sand.u32 %s43, 1
          %s234 = smul.addr %s233, 16
          %s235 = scalar_lea.vmem [#allocation3], %s234
          %s236 = smul.u32 4, %s27
          %s238 = ssub.s32 256, 256
          %239 = vsyncadd %s232, %s238
          %s240 = smul.addr %s26, 8
          %s241 = sadd.s32 %s236, %s240
          %s242 = smul.addr %s241, 64
          %s243 = scalar_lea.hbm %s0, %s242
          %s245 = sshll.u32 %s235, 4
          %s246 = int_to_ptr.vmem [resolvable:$true] %s245
          %248 = dma.hbm_to_vmem [thread:$0]  %s243, 256, %s246, %s232
        $region32: #{tpu_custom_call.1} parent=27 // pred_fallthru
          _
        // Predicated region
        $region33: #{tpu_custom_call.1} parent=27 // pred_check
          %p249 = pneg %p79
        $region34: #{tpu_custom_call.1} parent=27 // pred_check_branch
          %251 = sbr.rel (%p249) target = $region36
        $region35: #{tpu_custom_call.1} parent=27 // pred_region
          %s252 = sand.u32 %s19, 1
          %s253 = scalar_lea.sflag [#allocation7], %s252
          %s254 = sand.u32 %s69, 1
          %s255 = smul.addr %s254, 2048
          %s256 = scalar_lea.vmem [#allocation6], %s255
          %s257 = smul.u32 64, %s27
          %s259 = ssub.s32 32768, 32768
          %260 = vsyncadd %s253, %s259
          %s261 = smul.addr %s257, 8
          %s262 = smul.addr %s261, 64
          %s263 = scalar_lea.hbm %s1, %s262
          %s264 = sshll.u32 %s256, 4
          %s265 = int_to_ptr.vmem [resolvable:$true] %s264
          %270 = dma.hbm_to_vmem [thread:$0]  %s263, 32768, %s265, %s253, 512, 512, 32
        $region36: #{tpu_custom_call.1} parent=27 // pred_fallthru
          _
      $region28: #{tpu_custom_call.1} parent=5 // pred_fallthru
        _
      %p271 = scmp.le.s32.totalorder 1, %s19
      %p272 = scmp.lt.s32.totalorder %s19, 3
      %p273 = pnand %p271, %p272
      %p274 = pneg %p273
      // Predicated region
      $region37: #{tpu_custom_call.1} parent=5 // pred_check
        _
      $region38: #{tpu_custom_call.1} parent=5 // pred_check_branch
        %276 = sbr.rel (%p273) target = $region40
      $region39: #{tpu_custom_call.1} parent=5 // pred_region
        %s277 = ssub.s32 %s19, 1
        %s278 = sand.u32 %s46, 1
        %s279 = scalar_lea.sflag [#allocation4], %s278
        %s280 = sand.u32 %s46, 1
        %s281 = smul.addr %s280, 16
        %s282 = scalar_lea.vmem [#allocation3], %s281
        // Predicated region
        $region41: #{tpu_custom_call.1} parent=39 // pred_check
          %p283 = pneg %p59
        $region42: #{tpu_custom_call.1} parent=39 // pred_check_branch
          %285 = sbr.rel (%p283) target = $region44
        $region43: #{tpu_custom_call.1} parent=39 // pred_region
          %286 = dma.done %s279, 256
        $region44: #{tpu_custom_call.1} parent=39 // pred_fallthru
          _
        %s287 = sand.u32 %s24, 1
        %s288 = scalar_lea.sflag [#allocation7], %s287
        %s289 = sand.u32 %s72, 1
        %s290 = smul.addr %s289, 2048
        %s291 = scalar_lea.vmem [#allocation6], %s290
        // Predicated region
        $region45: #{tpu_custom_call.1} parent=39 // pred_check
          %p292 = pneg %p85
        $region46: #{tpu_custom_call.1} parent=39 // pred_check_branch
          %294 = sbr.rel (%p292) target = $region48
        $region47: #{tpu_custom_call.1} parent=39 // pred_region
          %295 = dma.done %s288, 32768
        $region48: #{tpu_custom_call.1} parent=39 // pred_fallthru
          _
        // Predicated region
        $region49: #{tpu_custom_call.1} parent=39 // pred_check
          %p296 = pneg %p106
        $region50: #{tpu_custom_call.1} parent=39 // pred_check_branch
          %298 = sbr.rel (%p296) target = $region52
        $region51: #{tpu_custom_call.1} parent=39 // pred_region
          %299 = dma.done [#allocation7], 128
        $region52: #{tpu_custom_call.1} parent=39 // pred_fallthru
          _
        // Predicated region
        $region53: #{tpu_custom_call.1} parent=39 // pred_check
          %p300 = pneg %p127
        $region54: #{tpu_custom_call.1} parent=39 // pred_check_branch
          %302 = sbr.rel (%p300) target = $region56
        $region55: #{tpu_custom_call.1} parent=39 // pred_region
          %303 = dma.done [#allocation10], 8192
        $region56: #{tpu_custom_call.1} parent=39 // pred_fallthru
          _
        // Predicated region
        $region57: #{tpu_custom_call.1} parent=39 // pred_check
          %p304 = pneg %p148
        $region58: #{tpu_custom_call.1} parent=39 // pred_check_branch
          %306 = sbr.rel (%p304) target = $region60
        $region59: #{tpu_custom_call.1} parent=39 // pred_region
          %307 = dma.done [#allocation10], 16
        $region60: #{tpu_custom_call.1} parent=39 // pred_fallthru
          _
        %s308 = sand.u32 %s46, 1
        %s309 = scalar_lea.sflag [#allocation4], %s308
        %s310 = sand.u32 %s46, 1
        %s311 = smul.addr %s310, 16
        %s312 = scalar_lea.vmem [#allocation3], %s311
        %p313 = pneg %p59
        %p314 = pneg %p56
        %s315 = sand.u32 %s24, 1
        %s316 = scalar_lea.sflag [#allocation7], %s315
        %s317 = sand.u32 %s72, 1
        %s318 = smul.addr %s317, 2048
        %s319 = scalar_lea.vmem [#allocation6], %s318
        %p320 = pneg %p85
        %p321 = pneg %p82
        %p322 = pneg %p106
        %p323 = pneg %p103
        %p324 = pneg %p127
        %p325 = pneg %p124
        %p326 = pneg %p148
        %p327 = pneg %p145
        %p328 = pneg %p174
        %p329 = pneg %p171
        %s330 = smul.u32 4, %s29
        %s331 = smul.u32 64, %s29
        %p333 = scmp.eq.s32.totalorder %s29, 0
        // Predicated region
        $region61: #{tpu_custom_call.1} parent=39 // pred_check
          %p334 = pneg %p333
        $region62: #{tpu_custom_call.1} parent=39 // pred_check_branch
          %336 = sbr.rel (%p334) target = $region64
        $region63: #{tpu_custom_call.1} parent=39 // pred_region
          %337 = vst [vmem:[#allocation2] sm:$0xff] 0.0
          %338 = vst [vmem:[#allocation2 + $0x8] sm:$0xff] 0.0
          %339 = vst [vmem:[#allocation2 + $0x10] sm:$0xff] 0.0
          %340 = vst [vmem:[#allocation2 + $0x18] sm:$0xff] 0.0
          %341 = vst [vmem:[#allocation2 + $0x20] sm:$0xff] 0.0
          %342 = vst [vmem:[#allocation2 + $0x28] sm:$0xff] 0.0
          %343 = vst [vmem:[#allocation2 + $0x30] sm:$0xff] 0.0
          %344 = vst [vmem:[#allocation2 + $0x38] sm:$0xff] 0.0
        $region64: #{tpu_custom_call.1} parent=39 // pred_fallthru
          _
        %v345 = vld [vmem:[#allocation2] sm:$0xff]
        %v346 = vld [vmem:[#allocation2 + $0x8] sm:$0xff]
        %v347 = vld [vmem:[#allocation2 + $0x10] sm:$0xff]
        %v348 = vld [vmem:[#allocation2 + $0x18] sm:$0xff]
        %v349 = vld [vmem:[#allocation2 + $0x20] sm:$0xff]
        %v350 = vld [vmem:[#allocation2 + $0x28] sm:$0xff]
        %v351 = vld [vmem:[#allocation2 + $0x30] sm:$0xff]
        %v352 = vld [vmem:[#allocation2 + $0x38] sm:$0xff]
        %v353 = vld [vmem:[%s282] sm:$0xff]
        %v354 = vld [vmem:[%s282 + $0x8] sm:$0xff]
        %v355 = vld [vmem:[%s291] sm:$0xff]
        %v356 = vld [vmem:[%s291 + $0x8] sm:$0xff]
        %v357 = vld [vmem:[%s291 + $0x10] sm:$0xff]
        %v358 = vld [vmem:[%s291 + $0x18] sm:$0xff]
        %v359 = vld [vmem:[%s291 + $0x20] sm:$0xff]
        %v360 = vld [vmem:[%s291 + $0x28] sm:$0xff]
        %v361 = vld [vmem:[%s291 + $0x30] sm:$0xff]
        %v362 = vld [vmem:[%s291 + $0x38] sm:$0xff]
        %v363 = vld [vmem:[%s291 + $0x40] sm:$0xff]
        %v364 = vld [vmem:[%s291 + $0x48] sm:$0xff]
        %v365 = vld [vmem:[%s291 + $0x50] sm:$0xff]
        %v366 = vld [vmem:[%s291 + $0x58] sm:$0xff]
        %v367 = vld [vmem:[%s291 + $0x60] sm:$0xff]
        %v368 = vld [vmem:[%s291 + $0x68] sm:$0xff]
        %v369 = vld [vmem:[%s291 + $0x70] sm:$0xff]
        %v370 = vld [vmem:[%s291 + $0x78] sm:$0xff]
        %v371 = vld [vmem:[%s291 + $0x80] sm:$0xff]
        %v372 = vld [vmem:[%s291 + $0x88] sm:$0xff]
        %v373 = vld [vmem:[%s291 + $0x90] sm:$0xff]
        %v374 = vld [vmem:[%s291 + $0x98] sm:$0xff]
        %v375 = vld [vmem:[%s291 + $0xa0] sm:$0xff]
        %v376 = vld [vmem:[%s291 + $0xa8] sm:$0xff]
        %v377 = vld [vmem:[%s291 + $0xb0] sm:$0xff]
        %v378 = vld [vmem:[%s291 + $0xb8] sm:$0xff]
        %v379 = vld [vmem:[%s291 + $0xc0] sm:$0xff]
        %v380 = vld [vmem:[%s291 + $0xc8] sm:$0xff]
        %v381 = vld [vmem:[%s291 + $0xd0] sm:$0xff]
        %v382 = vld [vmem:[%s291 + $0xd8] sm:$0xff]
        %v383 = vld [vmem:[%s291 + $0xe0] sm:$0xff]
        %v384 = vld [vmem:[%s291 + $0xe8] sm:$0xff]
        %v385 = vld [vmem:[%s291 + $0xf0] sm:$0xff]
        %v386 = vld [vmem:[%s291 + $0xf8] sm:$0xff]
        %v387 = vld [vmem:[%s291 + $0x100] sm:$0xff]
        %v388 = vld [vmem:[%s291 + $0x108] sm:$0xff]
        %v389 = vld [vmem:[%s291 + $0x110] sm:$0xff]
        %v390 = vld [vmem:[%s291 + $0x118] sm:$0xff]
        %v391 = vld [vmem:[%s291 + $0x120] sm:$0xff]
        %v392 = vld [vmem:[%s291 + $0x128] sm:$0xff]
        %v393 = vld [vmem:[%s291 + $0x130] sm:$0xff]
        %v394 = vld [vmem:[%s291 + $0x138] sm:$0xff]
        %v395 = vld [vmem:[%s291 + $0x140] sm:$0xff]
        %v396 = vld [vmem:[%s291 + $0x148] sm:$0xff]
        %v397 = vld [vmem:[%s291 + $0x150] sm:$0xff]
        %v398 = vld [vmem:[%s291 + $0x158] sm:$0xff]
        %v399 = vld [vmem:[%s291 + $0x160] sm:$0xff]
        %v400 = vld [vmem:[%s291 + $0x168] sm:$0xff]
        %v401 = vld [vmem:[%s291 + $0x170] sm:$0xff]
        %v402 = vld [vmem:[%s291 + $0x178] sm:$0xff]
        %v403 = vld [vmem:[%s291 + $0x180] sm:$0xff]
        %v404 = vld [vmem:[%s291 + $0x188] sm:$0xff]
        %v405 = vld [vmem:[%s291 + $0x190] sm:$0xff]
        %v406 = vld [vmem:[%s291 + $0x198] sm:$0xff]
        %v407 = vld [vmem:[%s291 + $0x1a0] sm:$0xff]
        %v408 = vld [vmem:[%s291 + $0x1a8] sm:$0xff]
        %v409 = vld [vmem:[%s291 + $0x1b0] sm:$0xff]
        %v410 = vld [vmem:[%s291 + $0x1b8] sm:$0xff]
        %v411 = vld [vmem:[%s291 + $0x1c0] sm:$0xff]
        %v412 = vld [vmem:[%s291 + $0x1c8] sm:$0xff]
        %v413 = vld [vmem:[%s291 + $0x1d0] sm:$0xff]
        %v414 = vld [vmem:[%s291 + $0x1d8] sm:$0xff]
        %v415 = vld [vmem:[%s291 + $0x1e0] sm:$0xff]
        %v416 = vld [vmem:[%s291 + $0x1e8] sm:$0xff]
        %v417 = vld [vmem:[%s291 + $0x1f0] sm:$0xff]
        %v418 = vld [vmem:[%s291 + $0x1f8] sm:$0xff]
        %v419 = vld [vmem:[%s291 + $0x200] sm:$0xff]
        %v420 = vld [vmem:[%s291 + $0x208] sm:$0xff]
        %v421 = vld [vmem:[%s291 + $0x210] sm:$0xff]
        %v422 = vld [vmem:[%s291 + $0x218] sm:$0xff]
        %v423 = vld [vmem:[%s291 + $0x220] sm:$0xff]
        %v424 = vld [vmem:[%s291 + $0x228] sm:$0xff]
        %v425 = vld [vmem:[%s291 + $0x230] sm:$0xff]
        %v426 = vld [vmem:[%s291 + $0x238] sm:$0xff]
        %v427 = vld [vmem:[%s291 + $0x240] sm:$0xff]
        %v428 = vld [vmem:[%s291 + $0x248] sm:$0xff]
        %v429 = vld [vmem:[%s291 + $0x250] sm:$0xff]
        %v430 = vld [vmem:[%s291 + $0x258] sm:$0xff]
        %v431 = vld [vmem:[%s291 + $0x260] sm:$0xff]
        %v432 = vld [vmem:[%s291 + $0x268] sm:$0xff]
        %v433 = vld [vmem:[%s291 + $0x270] sm:$0xff]
        %v434 = vld [vmem:[%s291 + $0x278] sm:$0xff]
        %v435 = vld [vmem:[%s291 + $0x280] sm:$0xff]
        %v436 = vld [vmem:[%s291 + $0x288] sm:$0xff]
        %v437 = vld [vmem:[%s291 + $0x290] sm:$0xff]
        %v438 = vld [vmem:[%s291 + $0x298] sm:$0xff]
        %v439 = vld [vmem:[%s291 + $0x2a0] sm:$0xff]
        %v440 = vld [vmem:[%s291 + $0x2a8] sm:$0xff]
        %v441 = vld [vmem:[%s291 + $0x2b0] sm:$0xff]
        %v442 = vld [vmem:[%s291 + $0x2b8] sm:$0xff]
        %v443 = vld [vmem:[%s291 + $0x2c0] sm:$0xff]
        %v444 = vld [vmem:[%s291 + $0x2c8] sm:$0xff]
        %v445 = vld [vmem:[%s291 + $0x2d0] sm:$0xff]
        %v446 = vld [vmem:[%s291 + $0x2d8] sm:$0xff]
        %v447 = vld [vmem:[%s291 + $0x2e0] sm:$0xff]
        %v448 = vld [vmem:[%s291 + $0x2e8] sm:$0xff]
        %v449 = vld [vmem:[%s291 + $0x2f0] sm:$0xff]
        %v450 = vld [vmem:[%s291 + $0x2f8] sm:$0xff]
        %v451 = vld [vmem:[%s291 + $0x300] sm:$0xff]
        %v452 = vld [vmem:[%s291 + $0x308] sm:$0xff]
        %v453 = vld [vmem:[%s291 + $0x310] sm:$0xff]
        %v454 = vld [vmem:[%s291 + $0x318] sm:$0xff]
        %v455 = vld [vmem:[%s291 + $0x320] sm:$0xff]
        %v456 = vld [vmem:[%s291 + $0x328] sm:$0xff]
        %v457 = vld [vmem:[%s291 + $0x330] sm:$0xff]
        %v458 = vld [vmem:[%s291 + $0x338] sm:$0xff]
        %v459 = vld [vmem:[%s291 + $0x340] sm:$0xff]
        %v460 = vld [vmem:[%s291 + $0x348] sm:$0xff]
        %v461 = vld [vmem:[%s291 + $0x350] sm:$0xff]
        %v462 = vld [vmem:[%s291 + $0x358] sm:$0xff]
        %v463 = vld [vmem:[%s291 + $0x360] sm:$0xff]
        %v464 = vld [vmem:[%s291 + $0x368] sm:$0xff]
        %v465 = vld [vmem:[%s291 + $0x370] sm:$0xff]
        %v466 = vld [vmem:[%s291 + $0x378] sm:$0xff]
        %v467 = vld [vmem:[%s291 + $0x380] sm:$0xff]
        %v468 = vld [vmem:[%s291 + $0x388] sm:$0xff]
        %v469 = vld [vmem:[%s291 + $0x390] sm:$0xff]
        %v470 = vld [vmem:[%s291 + $0x398] sm:$0xff]
        %v471 = vld [vmem:[%s291 + $0x3a0] sm:$0xff]
        %v472 = vld [vmem:[%s291 + $0x3a8] sm:$0xff]
        %v473 = vld [vmem:[%s291 + $0x3b0] sm:$0xff]
        %v474 = vld [vmem:[%s291 + $0x3b8] sm:$0xff]
        %v475 = vld [vmem:[%s291 + $0x3c0] sm:$0xff]
        %v476 = vld [vmem:[%s291 + $0x3c8] sm:$0xff]
        %v477 = vld [vmem:[%s291 + $0x3d0] sm:$0xff]
        %v478 = vld [vmem:[%s291 + $0x3d8] sm:$0xff]
        %v479 = vld [vmem:[%s291 + $0x3e0] sm:$0xff]
        %v480 = vld [vmem:[%s291 + $0x3e8] sm:$0xff]
        %v481 = vld [vmem:[%s291 + $0x3f0] sm:$0xff]
        %v482 = vld [vmem:[%s291 + $0x3f8] sm:$0xff]
        %v483 = vld [vmem:[%s291 + $0x400] sm:$0xff]
        %v484 = vld [vmem:[%s291 + $0x408] sm:$0xff]
        %v485 = vld [vmem:[%s291 + $0x410] sm:$0xff]
        %v486 = vld [vmem:[%s291 + $0x418] sm:$0xff]
        %v487 = vld [vmem:[%s291 + $0x420] sm:$0xff]
        %v488 = vld [vmem:[%s291 + $0x428] sm:$0xff]
        %v489 = vld [vmem:[%s291 + $0x430] sm:$0xff]
        %v490 = vld [vmem:[%s291 + $0x438] sm:$0xff]
        %v491 = vld [vmem:[%s291 + $0x440] sm:$0xff]
        %v492 = vld [vmem:[%s291 + $0x448] sm:$0xff]
        %v493 = vld [vmem:[%s291 + $0x450] sm:$0xff]
        %v494 = vld [vmem:[%s291 + $0x458] sm:$0xff]
        %v495 = vld [vmem:[%s291 + $0x460] sm:$0xff]
        %v496 = vld [vmem:[%s291 + $0x468] sm:$0xff]
        %v497 = vld [vmem:[%s291 + $0x470] sm:$0xff]
        %v498 = vld [vmem:[%s291 + $0x478] sm:$0xff]
        %v499 = vld [vmem:[%s291 + $0x480] sm:$0xff]
        %v500 = vld [vmem:[%s291 + $0x488] sm:$0xff]
        %v501 = vld [vmem:[%s291 + $0x490] sm:$0xff]
        %v502 = vld [vmem:[%s291 + $0x498] sm:$0xff]
        %v503 = vld [vmem:[%s291 + $0x4a0] sm:$0xff]
        %v504 = vld [vmem:[%s291 + $0x4a8] sm:$0xff]
        %v505 = vld [vmem:[%s291 + $0x4b0] sm:$0xff]
        %v506 = vld [vmem:[%s291 + $0x4b8] sm:$0xff]
        %v507 = vld [vmem:[%s291 + $0x4c0] sm:$0xff]
        %v508 = vld [vmem:[%s291 + $0x4c8] sm:$0xff]
        %v509 = vld [vmem:[%s291 + $0x4d0] sm:$0xff]
        %v510 = vld [vmem:[%s291 + $0x4d8] sm:$0xff]
        %v511 = vld [vmem:[%s291 + $0x4e0] sm:$0xff]
        %v512 = vld [vmem:[%s291 + $0x4e8] sm:$0xff]
        %v513 = vld [vmem:[%s291 + $0x4f0] sm:$0xff]
        %v514 = vld [vmem:[%s291 + $0x4f8] sm:$0xff]
        %v515 = vld [vmem:[%s291 + $0x500] sm:$0xff]
        %v516 = vld [vmem:[%s291 + $0x508] sm:$0xff]
        %v517 = vld [vmem:[%s291 + $0x510] sm:$0xff]
        %v518 = vld [vmem:[%s291 + $0x518] sm:$0xff]
        %v519 = vld [vmem:[%s291 + $0x520] sm:$0xff]
        %v520 = vld [vmem:[%s291 + $0x528] sm:$0xff]
        %v521 = vld [vmem:[%s291 + $0x530] sm:$0xff]
        %v522 = vld [vmem:[%s291 + $0x538] sm:$0xff]
        %v523 = vld [vmem:[%s291 + $0x540] sm:$0xff]
        %v524 = vld [vmem:[%s291 + $0x548] sm:$0xff]
        %v525 = vld [vmem:[%s291 + $0x550] sm:$0xff]
        %v526 = vld [vmem:[%s291 + $0x558] sm:$0xff]
        %v527 = vld [vmem:[%s291 + $0x560] sm:$0xff]
        %v528 = vld [vmem:[%s291 + $0x568] sm:$0xff]
        %v529 = vld [vmem:[%s291 + $0x570] sm:$0xff]
        %v530 = vld [vmem:[%s291 + $0x578] sm:$0xff]
        %v531 = vld [vmem:[%s291 + $0x580] sm:$0xff]
        %v532 = vld [vmem:[%s291 + $0x588] sm:$0xff]
        %v533 = vld [vmem:[%s291 + $0x590] sm:$0xff]
        %v534 = vld [vmem:[%s291 + $0x598] sm:$0xff]
        %v535 = vld [vmem:[%s291 + $0x5a0] sm:$0xff]
        %v536 = vld [vmem:[%s291 + $0x5a8] sm:$0xff]
        %v537 = vld [vmem:[%s291 + $0x5b0] sm:$0xff]
        %v538 = vld [vmem:[%s291 + $0x5b8] sm:$0xff]
        %v539 = vld [vmem:[%s291 + $0x5c0] sm:$0xff]
        %v540 = vld [vmem:[%s291 + $0x5c8] sm:$0xff]
        %v541 = vld [vmem:[%s291 + $0x5d0] sm:$0xff]
        %v542 = vld [vmem:[%s291 + $0x5d8] sm:$0xff]
        %v543 = vld [vmem:[%s291 + $0x5e0] sm:$0xff]
        %v544 = vld [vmem:[%s291 + $0x5e8] sm:$0xff]
        %v545 = vld [vmem:[%s291 + $0x5f0] sm:$0xff]
        %v546 = vld [vmem:[%s291 + $0x5f8] sm:$0xff]
        %v547 = vld [vmem:[%s291 + $0x600] sm:$0xff]
        %v548 = vld [vmem:[%s291 + $0x608] sm:$0xff]
        %v549 = vld [vmem:[%s291 + $0x610] sm:$0xff]
        %v550 = vld [vmem:[%s291 + $0x618] sm:$0xff]
        %v551 = vld [vmem:[%s291 + $0x620] sm:$0xff]
        %v552 = vld [vmem:[%s291 + $0x628] sm:$0xff]
        %v553 = vld [vmem:[%s291 + $0x630] sm:$0xff]
        %v554 = vld [vmem:[%s291 + $0x638] sm:$0xff]
        %v555 = vld [vmem:[%s291 + $0x640] sm:$0xff]
        %v556 = vld [vmem:[%s291 + $0x648] sm:$0xff]
        %v557 = vld [vmem:[%s291 + $0x650] sm:$0xff]
        %v558 = vld [vmem:[%s291 + $0x658] sm:$0xff]
        %v559 = vld [vmem:[%s291 + $0x660] sm:$0xff]
        %v560 = vld [vmem:[%s291 + $0x668] sm:$0xff]
        %v561 = vld [vmem:[%s291 + $0x670] sm:$0xff]
        %v562 = vld [vmem:[%s291 + $0x678] sm:$0xff]
        %v563 = vld [vmem:[%s291 + $0x680] sm:$0xff]
        %v564 = vld [vmem:[%s291 + $0x688] sm:$0xff]
        %v565 = vld [vmem:[%s291 + $0x690] sm:$0xff]
        %v566 = vld [vmem:[%s291 + $0x698] sm:$0xff]
        %v567 = vld [vmem:[%s291 + $0x6a0] sm:$0xff]
        %v568 = vld [vmem:[%s291 + $0x6a8] sm:$0xff]
        %v569 = vld [vmem:[%s291 + $0x6b0] sm:$0xff]
        %v570 = vld [vmem:[%s291 + $0x6b8] sm:$0xff]
        %v571 = vld [vmem:[%s291 + $0x6c0] sm:$0xff]
        %v572 = vld [vmem:[%s291 + $0x6c8] sm:$0xff]
        %v573 = vld [vmem:[%s291 + $0x6d0] sm:$0xff]
        %v574 = vld [vmem:[%s291 + $0x6d8] sm:$0xff]
        %v575 = vld [vmem:[%s291 + $0x6e0] sm:$0xff]
        %v576 = vld [vmem:[%s291 + $0x6e8] sm:$0xff]
        %v577 = vld [vmem:[%s291 + $0x6f0] sm:$0xff]
        %v578 = vld [vmem:[%s291 + $0x6f8] sm:$0xff]
        %v579 = vld [vmem:[%s291 + $0x700] sm:$0xff]
        %v580 = vld [vmem:[%s291 + $0x708] sm:$0xff]
        %v581 = vld [vmem:[%s291 + $0x710] sm:$0xff]
        %v582 = vld [vmem:[%s291 + $0x718] sm:$0xff]
        %v583 = vld [vmem:[%s291 + $0x720] sm:$0xff]
        %v584 = vld [vmem:[%s291 + $0x728] sm:$0xff]
        %v585 = vld [vmem:[%s291 + $0x730] sm:$0xff]
        %v586 = vld [vmem:[%s291 + $0x738] sm:$0xff]
        %v587 = vld [vmem:[%s291 + $0x740] sm:$0xff]
        %v588 = vld [vmem:[%s291 + $0x748] sm:$0xff]
        %v589 = vld [vmem:[%s291 + $0x750] sm:$0xff]
        %v590 = vld [vmem:[%s291 + $0x758] sm:$0xff]
        %v591 = vld [vmem:[%s291 + $0x760] sm:$0xff]
        %v592 = vld [vmem:[%s291 + $0x768] sm:$0xff]
        %v593 = vld [vmem:[%s291 + $0x770] sm:$0xff]
        %v594 = vld [vmem:[%s291 + $0x778] sm:$0xff]
        %v595 = vld [vmem:[%s291 + $0x780] sm:$0xff]
        %v596 = vld [vmem:[%s291 + $0x788] sm:$0xff]
        %v597 = vld [vmem:[%s291 + $0x790] sm:$0xff]
        %v598 = vld [vmem:[%s291 + $0x798] sm:$0xff]
        %v599 = vld [vmem:[%s291 + $0x7a0] sm:$0xff]
        %v600 = vld [vmem:[%s291 + $0x7a8] sm:$0xff]
        %v601 = vld [vmem:[%s291 + $0x7b0] sm:$0xff]
        %v602 = vld [vmem:[%s291 + $0x7b8] sm:$0xff]
        %v603 = vld [vmem:[%s291 + $0x7c0] sm:$0xff]
        %v604 = vld [vmem:[%s291 + $0x7c8] sm:$0xff]
        %v605 = vld [vmem:[%s291 + $0x7d0] sm:$0xff]
        %v606 = vld [vmem:[%s291 + $0x7d8] sm:$0xff]
        %v607 = vld [vmem:[%s291 + $0x7e0] sm:$0xff]
        %v608 = vld [vmem:[%s291 + $0x7e8] sm:$0xff]
        %v609 = vld [vmem:[%s291 + $0x7f0] sm:$0xff]
        %v610 = vld [vmem:[%s291 + $0x7f8] sm:$0xff]
        %v613 = vunpack.c.l.b16 %v353
        %v614 = vunpack.c.h.b16 %v353
        %v615 = vunpack.c.l.b16 %v354
        %v616 = vunpack.c.h.b16 %v354
        %v617 = vpack.c.b16 %v613, %v613
        %v618 = vpack.c.b16 %v614, %v614
        %v619 = vpack.c.b16 %v615, %v615
        %v620 = vpack.c.b16 %v616, %v616
        %v881 = vunpack.c.l.b16 %v355
        %v882 = vunpack.c.h.b16 %v355
        %v883 = vunpack.c.l.b16 %v356
        %v884 = vunpack.c.h.b16 %v356
        %v885 = vunpack.c.l.b16 %v357
        %v886 = vunpack.c.h.b16 %v357
        %v887 = vunpack.c.l.b16 %v358
        %v888 = vunpack.c.h.b16 %v358
        %v889 = vunpack.c.l.b16 %v359
        %v890 = vunpack.c.h.b16 %v359
        %v891 = vunpack.c.l.b16 %v360
        %v892 = vunpack.c.h.b16 %v360
        %v893 = vunpack.c.l.b16 %v361
        %v894 = vunpack.c.h.b16 %v361
        %v895 = vunpack.c.l.b16 %v362
        %v896 = vunpack.c.h.b16 %v362
        %v897 = vunpack.c.l.b16 %v363
        %v898 = vunpack.c.h.b16 %v363
        %v899 = vunpack.c.l.b16 %v364
        %v900 = vunpack.c.h.b16 %v364
        %v901 = vunpack.c.l.b16 %v365
        %v902 = vunpack.c.h.b16 %v365
        %v903 = vunpack.c.l.b16 %v366
        %v904 = vunpack.c.h.b16 %v366
        %v905 = vunpack.c.l.b16 %v367
        %v906 = vunpack.c.h.b16 %v367
        %v907 = vunpack.c.l.b16 %v368
        %v908 = vunpack.c.h.b16 %v368
        %v909 = vunpack.c.l.b16 %v369
        %v910 = vunpack.c.h.b16 %v369
        %v911 = vunpack.c.l.b16 %v370
        %v912 = vunpack.c.h.b16 %v370
        %v913 = vunpack.c.l.b16 %v371
        %v914 = vunpack.c.h.b16 %v371
        %v915 = vunpack.c.l.b16 %v372
        %v916 = vunpack.c.h.b16 %v372
        %v917 = vunpack.c.l.b16 %v373
        %v918 = vunpack.c.h.b16 %v373
        %v919 = vunpack.c.l.b16 %v374
        %v920 = vunpack.c.h.b16 %v374
        %v921 = vunpack.c.l.b16 %v375
        %v922 = vunpack.c.h.b16 %v375
        %v923 = vunpack.c.l.b16 %v376
        %v924 = vunpack.c.h.b16 %v376
        %v925 = vunpack.c.l.b16 %v377
        %v926 = vunpack.c.h.b16 %v377
        %v927 = vunpack.c.l.b16 %v378
        %v928 = vunpack.c.h.b16 %v378
        %v929 = vunpack.c.l.b16 %v379
        %v930 = vunpack.c.h.b16 %v379
        %v931 = vunpack.c.l.b16 %v380
        %v932 = vunpack.c.h.b16 %v380
        %v933 = vunpack.c.l.b16 %v381
        %v934 = vunpack.c.h.b16 %v381
        %v935 = vunpack.c.l.b16 %v382
        %v936 = vunpack.c.h.b16 %v382
        %v937 = vunpack.c.l.b16 %v383
        %v938 = vunpack.c.h.b16 %v383
        %v939 = vunpack.c.l.b16 %v384
        %v940 = vunpack.c.h.b16 %v384
        %v941 = vunpack.c.l.b16 %v385
        %v942 = vunpack.c.h.b16 %v385
        %v943 = vunpack.c.l.b16 %v386
        %v944 = vunpack.c.h.b16 %v386
        %v945 = vunpack.c.l.b16 %v387
        %v946 = vunpack.c.h.b16 %v387
        %v947 = vunpack.c.l.b16 %v388
        %v948 = vunpack.c.h.b16 %v388
        %v949 = vunpack.c.l.b16 %v389
        %v950 = vunpack.c.h.b16 %v389
        %v951 = vunpack.c.l.b16 %v390
        %v952 = vunpack.c.h.b16 %v390
        %v953 = vunpack.c.l.b16 %v391
        %v954 = vunpack.c.h.b16 %v391
        %v955 = vunpack.c.l.b16 %v392
        %v956 = vunpack.c.h.b16 %v392
        %v957 = vunpack.c.l.b16 %v393
        %v958 = vunpack.c.h.b16 %v393
        %v959 = vunpack.c.l.b16 %v394
        %v960 = vunpack.c.h.b16 %v394
        %v961 = vunpack.c.l.b16 %v395
        %v962 = vunpack.c.h.b16 %v395
        %v963 = vunpack.c.l.b16 %v396
        %v964 = vunpack.c.h.b16 %v396
        %v965 = vunpack.c.l.b16 %v397
        %v966 = vunpack.c.h.b16 %v397
        %v967 = vunpack.c.l.b16 %v398
        %v968 = vunpack.c.h.b16 %v398
        %v969 = vunpack.c.l.b16 %v399
        %v970 = vunpack.c.h.b16 %v399
        %v971 = vunpack.c.l.b16 %v400
        %v972 = vunpack.c.h.b16 %v400
        %v973 = vunpack.c.l.b16 %v401
        %v974 = vunpack.c.h.b16 %v401
        %v975 = vunpack.c.l.b16 %v402
        %v976 = vunpack.c.h.b16 %v402
        %v977 = vunpack.c.l.b16 %v403
        %v978 = vunpack.c.h.b16 %v403
        %v979 = vunpack.c.l.b16 %v404
        %v980 = vunpack.c.h.b16 %v404
        %v981 = vunpack.c.l.b16 %v405
        %v982 = vunpack.c.h.b16 %v405
        %v983 = vunpack.c.l.b16 %v406
        %v984 = vunpack.c.h.b16 %v406
        %v985 = vunpack.c.l.b16 %v407
        %v986 = vunpack.c.h.b16 %v407
        %v987 = vunpack.c.l.b16 %v408
        %v988 = vunpack.c.h.b16 %v408
        %v989 = vunpack.c.l.b16 %v409
        %v990 = vunpack.c.h.b16 %v409
        %v991 = vunpack.c.l.b16 %v410
        %v992 = vunpack.c.h.b16 %v410
        %v993 = vunpack.c.l.b16 %v411
        %v994 = vunpack.c.h.b16 %v411
        %v995 = vunpack.c.l.b16 %v412
        %v996 = vunpack.c.h.b16 %v412
        %v997 = vunpack.c.l.b16 %v413
        %v998 = vunpack.c.h.b16 %v413
        %v999 = vunpack.c.l.b16 %v414
        %v1000 = vunpack.c.h.b16 %v414
        %v1001 = vunpack.c.l.b16 %v415
        %v1002 = vunpack.c.h.b16 %v415
        %v1003 = vunpack.c.l.b16 %v416
        %v1004 = vunpack.c.h.b16 %v416
        %v1005 = vunpack.c.l.b16 %v417
        %v1006 = vunpack.c.h.b16 %v417
        %v1007 = vunpack.c.l.b16 %v418
        %v1008 = vunpack.c.h.b16 %v418
        %v1009 = vunpack.c.l.b16 %v419
        %v1010 = vunpack.c.h.b16 %v419
        %v1011 = vunpack.c.l.b16 %v420
        %v1012 = vunpack.c.h.b16 %v420
        %v1013 = vunpack.c.l.b16 %v421
        %v1014 = vunpack.c.h.b16 %v421
        %v1015 = vunpack.c.l.b16 %v422
        %v1016 = vunpack.c.h.b16 %v422
        %v1017 = vunpack.c.l.b16 %v423
        %v1018 = vunpack.c.h.b16 %v423
        %v1019 = vunpack.c.l.b16 %v424
        %v1020 = vunpack.c.h.b16 %v424
        %v1021 = vunpack.c.l.b16 %v425
        %v1022 = vunpack.c.h.b16 %v425
        %v1023 = vunpack.c.l.b16 %v426
        %v1024 = vunpack.c.h.b16 %v426
        %v1025 = vunpack.c.l.b16 %v427
        %v1026 = vunpack.c.h.b16 %v427
        %v1027 = vunpack.c.l.b16 %v428
        %v1028 = vunpack.c.h.b16 %v428
        %v1029 = vunpack.c.l.b16 %v429
        %v1030 = vunpack.c.h.b16 %v429
        %v1031 = vunpack.c.l.b16 %v430
        %v1032 = vunpack.c.h.b16 %v430
        %v1033 = vunpack.c.l.b16 %v431
        %v1034 = vunpack.c.h.b16 %v431
        %v1035 = vunpack.c.l.b16 %v432
        %v1036 = vunpack.c.h.b16 %v432
        %v1037 = vunpack.c.l.b16 %v433
        %v1038 = vunpack.c.h.b16 %v433
        %v1039 = vunpack.c.l.b16 %v434
        %v1040 = vunpack.c.h.b16 %v434
        %v1041 = vunpack.c.l.b16 %v435
        %v1042 = vunpack.c.h.b16 %v435
        %v1043 = vunpack.c.l.b16 %v436
        %v1044 = vunpack.c.h.b16 %v436
        %v1045 = vunpack.c.l.b16 %v437
        %v1046 = vunpack.c.h.b16 %v437
        %v1047 = vunpack.c.l.b16 %v438
        %v1048 = vunpack.c.h.b16 %v438
        %v1049 = vunpack.c.l.b16 %v439
        %v1050 = vunpack.c.h.b16 %v439
        %v1051 = vunpack.c.l.b16 %v440
        %v1052 = vunpack.c.h.b16 %v440
        %v1053 = vunpack.c.l.b16 %v441
        %v1054 = vunpack.c.h.b16 %v441
        %v1055 = vunpack.c.l.b16 %v442
        %v1056 = vunpack.c.h.b16 %v442
        %v1057 = vunpack.c.l.b16 %v443
        %v1058 = vunpack.c.h.b16 %v443
        %v1059 = vunpack.c.l.b16 %v444
        %v1060 = vunpack.c.h.b16 %v444
        %v1061 = vunpack.c.l.b16 %v445
        %v1062 = vunpack.c.h.b16 %v445
        %v1063 = vunpack.c.l.b16 %v446
        %v1064 = vunpack.c.h.b16 %v446
        %v1065 = vunpack.c.l.b16 %v447
        %v1066 = vunpack.c.h.b16 %v447
        %v1067 = vunpack.c.l.b16 %v448
        %v1068 = vunpack.c.h.b16 %v448
        %v1069 = vunpack.c.l.b16 %v449
        %v1070 = vunpack.c.h.b16 %v449
        %v1071 = vunpack.c.l.b16 %v450
        %v1072 = vunpack.c.h.b16 %v450
        %v1073 = vunpack.c.l.b16 %v451
        %v1074 = vunpack.c.h.b16 %v451
        %v1075 = vunpack.c.l.b16 %v452
        %v1076 = vunpack.c.h.b16 %v452
        %v1077 = vunpack.c.l.b16 %v453
        %v1078 = vunpack.c.h.b16 %v453
        %v1079 = vunpack.c.l.b16 %v454
        %v1080 = vunpack.c.h.b16 %v454
        %v1081 = vunpack.c.l.b16 %v455
        %v1082 = vunpack.c.h.b16 %v455
        %v1083 = vunpack.c.l.b16 %v456
        %v1084 = vunpack.c.h.b16 %v456
        %v1085 = vunpack.c.l.b16 %v457
        %v1086 = vunpack.c.h.b16 %v457
        %v1087 = vunpack.c.l.b16 %v458
        %v1088 = vunpack.c.h.b16 %v458
        %v1089 = vunpack.c.l.b16 %v459
        %v1090 = vunpack.c.h.b16 %v459
        %v1091 = vunpack.c.l.b16 %v460
        %v1092 = vunpack.c.h.b16 %v460
        %v1093 = vunpack.c.l.b16 %v461
        %v1094 = vunpack.c.h.b16 %v461
        %v1095 = vunpack.c.l.b16 %v462
        %v1096 = vunpack.c.h.b16 %v462
        %v1097 = vunpack.c.l.b16 %v463
        %v1098 = vunpack.c.h.b16 %v463
        %v1099 = vunpack.c.l.b16 %v464
        %v1100 = vunpack.c.h.b16 %v464
        %v1101 = vunpack.c.l.b16 %v465
        %v1102 = vunpack.c.h.b16 %v465
        %v1103 = vunpack.c.l.b16 %v466
        %v1104 = vunpack.c.h.b16 %v466
        %v1105 = vunpack.c.l.b16 %v467
        %v1106 = vunpack.c.h.b16 %v467
        %v1107 = vunpack.c.l.b16 %v468
        %v1108 = vunpack.c.h.b16 %v468
        %v1109 = vunpack.c.l.b16 %v469
        %v1110 = vunpack.c.h.b16 %v469
        %v1111 = vunpack.c.l.b16 %v470
        %v1112 = vunpack.c.h.b16 %v470
        %v1113 = vunpack.c.l.b16 %v471
        %v1114 = vunpack.c.h.b16 %v471
        %v1115 = vunpack.c.l.b16 %v472
        %v1116 = vunpack.c.h.b16 %v472
        %v1117 = vunpack.c.l.b16 %v473
        %v1118 = vunpack.c.h.b16 %v473
        %v1119 = vunpack.c.l.b16 %v474
        %v1120 = vunpack.c.h.b16 %v474
        %v1121 = vunpack.c.l.b16 %v475
        %v1122 = vunpack.c.h.b16 %v475
        %v1123 = vunpack.c.l.b16 %v476
        %v1124 = vunpack.c.h.b16 %v476
        %v1125 = vunpack.c.l.b16 %v477
        %v1126 = vunpack.c.h.b16 %v477
        %v1127 = vunpack.c.l.b16 %v478
        %v1128 = vunpack.c.h.b16 %v478
        %v1129 = vunpack.c.l.b16 %v479
        %v1130 = vunpack.c.h.b16 %v479
        %v1131 = vunpack.c.l.b16 %v480
        %v1132 = vunpack.c.h.b16 %v480
        %v1133 = vunpack.c.l.b16 %v481
        %v1134 = vunpack.c.h.b16 %v481
        %v1135 = vunpack.c.l.b16 %v482
        %v1136 = vunpack.c.h.b16 %v482
        %v1137 = vunpack.c.l.b16 %v483
        %v1138 = vunpack.c.h.b16 %v483
        %v1139 = vunpack.c.l.b16 %v484
        %v1140 = vunpack.c.h.b16 %v484
        %v1141 = vunpack.c.l.b16 %v485
        %v1142 = vunpack.c.h.b16 %v485
        %v1143 = vunpack.c.l.b16 %v486
        %v1144 = vunpack.c.h.b16 %v486
        %v1145 = vunpack.c.l.b16 %v487
        %v1146 = vunpack.c.h.b16 %v487
        %v1147 = vunpack.c.l.b16 %v488
        %v1148 = vunpack.c.h.b16 %v488
        %v1149 = vunpack.c.l.b16 %v489
        %v1150 = vunpack.c.h.b16 %v489
        %v1151 = vunpack.c.l.b16 %v490
        %v1152 = vunpack.c.h.b16 %v490
        %v1153 = vunpack.c.l.b16 %v491
        %v1154 = vunpack.c.h.b16 %v491
        %v1155 = vunpack.c.l.b16 %v492
        %v1156 = vunpack.c.h.b16 %v492
        %v1157 = vunpack.c.l.b16 %v493
        %v1158 = vunpack.c.h.b16 %v493
        %v1159 = vunpack.c.l.b16 %v494
        %v1160 = vunpack.c.h.b16 %v494
        %v1161 = vunpack.c.l.b16 %v495
        %v1162 = vunpack.c.h.b16 %v495
        %v1163 = vunpack.c.l.b16 %v496
        %v1164 = vunpack.c.h.b16 %v496
        %v1165 = vunpack.c.l.b16 %v497
        %v1166 = vunpack.c.h.b16 %v497
        %v1167 = vunpack.c.l.b16 %v498
        %v1168 = vunpack.c.h.b16 %v498
        %v1169 = vunpack.c.l.b16 %v499
        %v1170 = vunpack.c.h.b16 %v499
        %v1171 = vunpack.c.l.b16 %v500
        %v1172 = vunpack.c.h.b16 %v500
        %v1173 = vunpack.c.l.b16 %v501
        %v1174 = vunpack.c.h.b16 %v501
        %v1175 = vunpack.c.l.b16 %v502
        %v1176 = vunpack.c.h.b16 %v502
        %v1177 = vunpack.c.l.b16 %v503
        %v1178 = vunpack.c.h.b16 %v503
        %v1179 = vunpack.c.l.b16 %v504
        %v1180 = vunpack.c.h.b16 %v504
        %v1181 = vunpack.c.l.b16 %v505
        %v1182 = vunpack.c.h.b16 %v505
        %v1183 = vunpack.c.l.b16 %v506
        %v1184 = vunpack.c.h.b16 %v506
        %v1185 = vunpack.c.l.b16 %v507
        %v1186 = vunpack.c.h.b16 %v507
        %v1187 = vunpack.c.l.b16 %v508
        %v1188 = vunpack.c.h.b16 %v508
        %v1189 = vunpack.c.l.b16 %v509
        %v1190 = vunpack.c.h.b16 %v509
        %v1191 = vunpack.c.l.b16 %v510
        %v1192 = vunpack.c.h.b16 %v510
        %v1193 = vunpack.c.l.b16 %v511
        %v1194 = vunpack.c.h.b16 %v511
        %v1195 = vunpack.c.l.b16 %v512
        %v1196 = vunpack.c.h.b16 %v512
        %v1197 = vunpack.c.l.b16 %v513
        %v1198 = vunpack.c.h.b16 %v513
        %v1199 = vunpack.c.l.b16 %v514
        %v1200 = vunpack.c.h.b16 %v514
        %v1201 = vunpack.c.l.b16 %v515
        %v1202 = vunpack.c.h.b16 %v515
        %v1203 = vunpack.c.l.b16 %v516
        %v1204 = vunpack.c.h.b16 %v516
        %v1205 = vunpack.c.l.b16 %v517
        %v1206 = vunpack.c.h.b16 %v517
        %v1207 = vunpack.c.l.b16 %v518
        %v1208 = vunpack.c.h.b16 %v518
        %v1209 = vunpack.c.l.b16 %v519
        %v1210 = vunpack.c.h.b16 %v519
        %v1211 = vunpack.c.l.b16 %v520
        %v1212 = vunpack.c.h.b16 %v520
        %v1213 = vunpack.c.l.b16 %v521
        %v1214 = vunpack.c.h.b16 %v521
        %v1215 = vunpack.c.l.b16 %v522
        %v1216 = vunpack.c.h.b16 %v522
        %v1217 = vunpack.c.l.b16 %v523
        %v1218 = vunpack.c.h.b16 %v523
        %v1219 = vunpack.c.l.b16 %v524
        %v1220 = vunpack.c.h.b16 %v524
        %v1221 = vunpack.c.l.b16 %v525
        %v1222 = vunpack.c.h.b16 %v525
        %v1223 = vunpack.c.l.b16 %v526
        %v1224 = vunpack.c.h.b16 %v526
        %v1225 = vunpack.c.l.b16 %v527
        %v1226 = vunpack.c.h.b16 %v527
        %v1227 = vunpack.c.l.b16 %v528
        %v1228 = vunpack.c.h.b16 %v528
        %v1229 = vunpack.c.l.b16 %v529
        %v1230 = vunpack.c.h.b16 %v529
        %v1231 = vunpack.c.l.b16 %v530
        %v1232 = vunpack.c.h.b16 %v530
        %v1233 = vunpack.c.l.b16 %v531
        %v1234 = vunpack.c.h.b16 %v531
        %v1235 = vunpack.c.l.b16 %v532
        %v1236 = vunpack.c.h.b16 %v532
        %v1237 = vunpack.c.l.b16 %v533
        %v1238 = vunpack.c.h.b16 %v533
        %v1239 = vunpack.c.l.b16 %v534
        %v1240 = vunpack.c.h.b16 %v534
        %v1241 = vunpack.c.l.b16 %v535
        %v1242 = vunpack.c.h.b16 %v535
        %v1243 = vunpack.c.l.b16 %v536
        %v1244 = vunpack.c.h.b16 %v536
        %v1245 = vunpack.c.l.b16 %v537
        %v1246 = vunpack.c.h.b16 %v537
        %v1247 = vunpack.c.l.b16 %v538
        %v1248 = vunpack.c.h.b16 %v538
        %v1249 = vunpack.c.l.b16 %v539
        %v1250 = vunpack.c.h.b16 %v539
        %v1251 = vunpack.c.l.b16 %v540
        %v1252 = vunpack.c.h.b16 %v540
        %v1253 = vunpack.c.l.b16 %v541
        %v1254 = vunpack.c.h.b16 %v541
        %v1255 = vunpack.c.l.b16 %v542
        %v1256 = vunpack.c.h.b16 %v542
        %v1257 = vunpack.c.l.b16 %v543
        %v1258 = vunpack.c.h.b16 %v543
        %v1259 = vunpack.c.l.b16 %v544
        %v1260 = vunpack.c.h.b16 %v544
        %v1261 = vunpack.c.l.b16 %v545
        %v1262 = vunpack.c.h.b16 %v545
        %v1263 = vunpack.c.l.b16 %v546
        %v1264 = vunpack.c.h.b16 %v546
        %v1265 = vunpack.c.l.b16 %v547
        %v1266 = vunpack.c.h.b16 %v547
        %v1267 = vunpack.c.l.b16 %v548
        %v1268 = vunpack.c.h.b16 %v548
        %v1269 = vunpack.c.l.b16 %v549
        %v1270 = vunpack.c.h.b16 %v549
        %v1271 = vunpack.c.l.b16 %v550
        %v1272 = vunpack.c.h.b16 %v550
        %v1273 = vunpack.c.l.b16 %v551
        %v1274 = vunpack.c.h.b16 %v551
        %v1275 = vunpack.c.l.b16 %v552
        %v1276 = vunpack.c.h.b16 %v552
        %v1277 = vunpack.c.l.b16 %v553
        %v1278 = vunpack.c.h.b16 %v553
        %v1279 = vunpack.c.l.b16 %v554
        %v1280 = vunpack.c.h.b16 %v554
        %v1281 = vunpack.c.l.b16 %v555
        %v1282 = vunpack.c.h.b16 %v555
        %v1283 = vunpack.c.l.b16 %v556
        %v1284 = vunpack.c.h.b16 %v556
        %v1285 = vunpack.c.l.b16 %v557
        %v1286 = vunpack.c.h.b16 %v557
        %v1287 = vunpack.c.l.b16 %v558
        %v1288 = vunpack.c.h.b16 %v558
        %v1289 = vunpack.c.l.b16 %v559
        %v1290 = vunpack.c.h.b16 %v559
        %v1291 = vunpack.c.l.b16 %v560
        %v1292 = vunpack.c.h.b16 %v560
        %v1293 = vunpack.c.l.b16 %v561
        %v1294 = vunpack.c.h.b16 %v561
        %v1295 = vunpack.c.l.b16 %v562
        %v1296 = vunpack.c.h.b16 %v562
        %v1297 = vunpack.c.l.b16 %v563
        %v1298 = vunpack.c.h.b16 %v563
        %v1299 = vunpack.c.l.b16 %v564
        %v1300 = vunpack.c.h.b16 %v564
        %v1301 = vunpack.c.l.b16 %v565
        %v1302 = vunpack.c.h.b16 %v565
        %v1303 = vunpack.c.l.b16 %v566
        %v1304 = vunpack.c.h.b16 %v566
        %v1305 = vunpack.c.l.b16 %v567
        %v1306 = vunpack.c.h.b16 %v567
        %v1307 = vunpack.c.l.b16 %v568
        %v1308 = vunpack.c.h.b16 %v568
        %v1309 = vunpack.c.l.b16 %v569
        %v1310 = vunpack.c.h.b16 %v569
        %v1311 = vunpack.c.l.b16 %v570
        %v1312 = vunpack.c.h.b16 %v570
        %v1313 = vunpack.c.l.b16 %v571
        %v1314 = vunpack.c.h.b16 %v571
        %v1315 = vunpack.c.l.b16 %v572
        %v1316 = vunpack.c.h.b16 %v572
        %v1317 = vunpack.c.l.b16 %v573
        %v1318 = vunpack.c.h.b16 %v573
        %v1319 = vunpack.c.l.b16 %v574
        %v1320 = vunpack.c.h.b16 %v574
        %v1321 = vunpack.c.l.b16 %v575
        %v1322 = vunpack.c.h.b16 %v575
        %v1323 = vunpack.c.l.b16 %v576
        %v1324 = vunpack.c.h.b16 %v576
        %v1325 = vunpack.c.l.b16 %v577
        %v1326 = vunpack.c.h.b16 %v577
        %v1327 = vunpack.c.l.b16 %v578
        %v1328 = vunpack.c.h.b16 %v578
        %v1329 = vunpack.c.l.b16 %v579
        %v1330 = vunpack.c.h.b16 %v579
        %v1331 = vunpack.c.l.b16 %v580
        %v1332 = vunpack.c.h.b16 %v580
        %v1333 = vunpack.c.l.b16 %v581
        %v1334 = vunpack.c.h.b16 %v581
        %v1335 = vunpack.c.l.b16 %v582
        %v1336 = vunpack.c.h.b16 %v582
        %v1337 = vunpack.c.l.b16 %v583
        %v1338 = vunpack.c.h.b16 %v583
        %v1339 = vunpack.c.l.b16 %v584
        %v1340 = vunpack.c.h.b16 %v584
        %v1341 = vunpack.c.l.b16 %v585
        %v1342 = vunpack.c.h.b16 %v585
        %v1343 = vunpack.c.l.b16 %v586
        %v1344 = vunpack.c.h.b16 %v586
        %v1345 = vunpack.c.l.b16 %v587
        %v1346 = vunpack.c.h.b16 %v587
        %v1347 = vunpack.c.l.b16 %v588
        %v1348 = vunpack.c.h.b16 %v588
        %v1349 = vunpack.c.l.b16 %v589
        %v1350 = vunpack.c.h.b16 %v589
        %v1351 = vunpack.c.l.b16 %v590
        %v1352 = vunpack.c.h.b16 %v590
        %v1353 = vunpack.c.l.b16 %v591
        %v1354 = vunpack.c.h.b16 %v591
        %v1355 = vunpack.c.l.b16 %v592
        %v1356 = vunpack.c.h.b16 %v592
        %v1357 = vunpack.c.l.b16 %v593
        %v1358 = vunpack.c.h.b16 %v593
        %v1359 = vunpack.c.l.b16 %v594
        %v1360 = vunpack.c.h.b16 %v594
        %v1361 = vunpack.c.l.b16 %v595
        %v1362 = vunpack.c.h.b16 %v595
        %v1363 = vunpack.c.l.b16 %v596
        %v1364 = vunpack.c.h.b16 %v596
        %v1365 = vunpack.c.l.b16 %v597
        %v1366 = vunpack.c.h.b16 %v597
        %v1367 = vunpack.c.l.b16 %v598
        %v1368 = vunpack.c.h.b16 %v598
        %v1369 = vunpack.c.l.b16 %v599
        %v1370 = vunpack.c.h.b16 %v599
        %v1371 = vunpack.c.l.b16 %v600
        %v1372 = vunpack.c.h.b16 %v600
        %v1373 = vunpack.c.l.b16 %v601
        %v1374 = vunpack.c.h.b16 %v601
        %v1375 = vunpack.c.l.b16 %v602
        %v1376 = vunpack.c.h.b16 %v602
        %v1377 = vunpack.c.l.b16 %v603
        %v1378 = vunpack.c.h.b16 %v603
        %v1379 = vunpack.c.l.b16 %v604
        %v1380 = vunpack.c.h.b16 %v604
        %v1381 = vunpack.c.l.b16 %v605
        %v1382 = vunpack.c.h.b16 %v605
        %v1383 = vunpack.c.l.b16 %v606
        %v1384 = vunpack.c.h.b16 %v606
        %v1385 = vunpack.c.l.b16 %v607
        %v1386 = vunpack.c.h.b16 %v607
        %v1387 = vunpack.c.l.b16 %v608
        %v1388 = vunpack.c.h.b16 %v608
        %v1389 = vunpack.c.l.b16 %v609
        %v1390 = vunpack.c.h.b16 %v609
        %v1391 = vunpack.c.l.b16 %v610
        %v1392 = vunpack.c.h.b16 %v610
        %v1393 = vpack.c.b16 %v889, %v881
        %v1394 = vpack.c.b16 %v890, %v882
        %v1395 = vpack.c.b16 %v891, %v883
        %v1396 = vpack.c.b16 %v892, %v884
        %v1397 = vpack.c.b16 %v893, %v885
        %v1398 = vpack.c.b16 %v894, %v886
        %v1399 = vpack.c.b16 %v895, %v887
        %v1400 = vpack.c.b16 %v896, %v888
        %v1401 = vpack.c.b16 %v905, %v897
        %v1402 = vpack.c.b16 %v906, %v898
        %v1403 = vpack.c.b16 %v907, %v899
        %v1404 = vpack.c.b16 %v908, %v900
        %v1405 = vpack.c.b16 %v909, %v901
        %v1406 = vpack.c.b16 %v910, %v902
        %v1407 = vpack.c.b16 %v911, %v903
        %v1408 = vpack.c.b16 %v912, %v904
        %v1409 = vpack.c.b16 %v921, %v913
        %v1410 = vpack.c.b16 %v922, %v914
        %v1411 = vpack.c.b16 %v923, %v915
        %v1412 = vpack.c.b16 %v924, %v916
        %v1413 = vpack.c.b16 %v925, %v917
        %v1414 = vpack.c.b16 %v926, %v918
        %v1415 = vpack.c.b16 %v927, %v919
        %v1416 = vpack.c.b16 %v928, %v920
        %v1417 = vpack.c.b16 %v937, %v929
        %v1418 = vpack.c.b16 %v938, %v930
        %v1419 = vpack.c.b16 %v939, %v931
        %v1420 = vpack.c.b16 %v940, %v932
        %v1421 = vpack.c.b16 %v941, %v933
        %v1422 = vpack.c.b16 %v942, %v934
        %v1423 = vpack.c.b16 %v943, %v935
        %v1424 = vpack.c.b16 %v944, %v936
        %v1425 = vpack.c.b16 %v953, %v945
        %v1426 = vpack.c.b16 %v954, %v946
        %v1427 = vpack.c.b16 %v955, %v947
        %v1428 = vpack.c.b16 %v956, %v948
        %v1429 = vpack.c.b16 %v957, %v949
        %v1430 = vpack.c.b16 %v958, %v950
        %v1431 = vpack.c.b16 %v959, %v951
        %v1432 = vpack.c.b16 %v960, %v952
        %v1433 = vpack.c.b16 %v969, %v961
        %v1434 = vpack.c.b16 %v970, %v962
        %v1435 = vpack.c.b16 %v971, %v963
        %v1436 = vpack.c.b16 %v972, %v964
        %v1437 = vpack.c.b16 %v973, %v965
        %v1438 = vpack.c.b16 %v974, %v966
        %v1439 = vpack.c.b16 %v975, %v967
        %v1440 = vpack.c.b16 %v976, %v968
        %v1441 = vpack.c.b16 %v985, %v977
        %v1442 = vpack.c.b16 %v986, %v978
        %v1443 = vpack.c.b16 %v987, %v979
        %v1444 = vpack.c.b16 %v988, %v980
        %v1445 = vpack.c.b16 %v989, %v981
        %v1446 = vpack.c.b16 %v990, %v982
        %v1447 = vpack.c.b16 %v991, %v983
        %v1448 = vpack.c.b16 %v992, %v984
        %v1449 = vpack.c.b16 %v1001, %v993
        %v1450 = vpack.c.b16 %v1002, %v994
        %v1451 = vpack.c.b16 %v1003, %v995
        %v1452 = vpack.c.b16 %v1004, %v996
        %v1453 = vpack.c.b16 %v1005, %v997
        %v1454 = vpack.c.b16 %v1006, %v998
        %v1455 = vpack.c.b16 %v1007, %v999
        %v1456 = vpack.c.b16 %v1008, %v1000
        %v1457 = vpack.c.b16 %v1017, %v1009
        %v1458 = vpack.c.b16 %v1018, %v1010
        %v1459 = vpack.c.b16 %v1019, %v1011
        %v1460 = vpack.c.b16 %v1020, %v1012
        %v1461 = vpack.c.b16 %v1021, %v1013
        %v1462 = vpack.c.b16 %v1022, %v1014
        %v1463 = vpack.c.b16 %v1023, %v1015
        %v1464 = vpack.c.b16 %v1024, %v1016
        %v1465 = vpack.c.b16 %v1033, %v1025
        %v1466 = vpack.c.b16 %v1034, %v1026
        %v1467 = vpack.c.b16 %v1035, %v1027
        %v1468 = vpack.c.b16 %v1036, %v1028
        %v1469 = vpack.c.b16 %v1037, %v1029
        %v1470 = vpack.c.b16 %v1038, %v1030
        %v1471 = vpack.c.b16 %v1039, %v1031
        %v1472 = vpack.c.b16 %v1040, %v1032
        %v1473 = vpack.c.b16 %v1049, %v1041
        %v1474 = vpack.c.b16 %v1050, %v1042
        %v1475 = vpack.c.b16 %v1051, %v1043
        %v1476 = vpack.c.b16 %v1052, %v1044
        %v1477 = vpack.c.b16 %v1053, %v1045
        %v1478 = vpack.c.b16 %v1054, %v1046
        %v1479 = vpack.c.b16 %v1055, %v1047
        %v1480 = vpack.c.b16 %v1056, %v1048
        %v1481 = vpack.c.b16 %v1065, %v1057
        %v1482 = vpack.c.b16 %v1066, %v1058
        %v1483 = vpack.c.b16 %v1067, %v1059
        %v1484 = vpack.c.b16 %v1068, %v1060
        %v1485 = vpack.c.b16 %v1069, %v1061
        %v1486 = vpack.c.b16 %v1070, %v1062
        %v1487 = vpack.c.b16 %v1071, %v1063
        %v1488 = vpack.c.b16 %v1072, %v1064
        %v1489 = vpack.c.b16 %v1081, %v1073
        %v1490 = vpack.c.b16 %v1082, %v1074
        %v1491 = vpack.c.b16 %v1083, %v1075
        %v1492 = vpack.c.b16 %v1084, %v1076
        %v1493 = vpack.c.b16 %v1085, %v1077
        %v1494 = vpack.c.b16 %v1086, %v1078
        %v1495 = vpack.c.b16 %v1087, %v1079
        %v1496 = vpack.c.b16 %v1088, %v1080
        %v1497 = vpack.c.b16 %v1097, %v1089
        %v1498 = vpack.c.b16 %v1098, %v1090
        %v1499 = vpack.c.b16 %v1099, %v1091
        %v1500 = vpack.c.b16 %v1100, %v1092
        %v1501 = vpack.c.b16 %v1101, %v1093
        %v1502 = vpack.c.b16 %v1102, %v1094
        %v1503 = vpack.c.b16 %v1103, %v1095
        %v1504 = vpack.c.b16 %v1104, %v1096
        %v1505 = vpack.c.b16 %v1113, %v1105
        %v1506 = vpack.c.b16 %v1114, %v1106
        %v1507 = vpack.c.b16 %v1115, %v1107
        %v1508 = vpack.c.b16 %v1116, %v1108
        %v1509 = vpack.c.b16 %v1117, %v1109
        %v1510 = vpack.c.b16 %v1118, %v1110
        %v1511 = vpack.c.b16 %v1119, %v1111
        %v1512 = vpack.c.b16 %v1120, %v1112
        %v1513 = vpack.c.b16 %v1129, %v1121
        %v1514 = vpack.c.b16 %v1130, %v1122
        %v1515 = vpack.c.b16 %v1131, %v1123
        %v1516 = vpack.c.b16 %v1132, %v1124
        %v1517 = vpack.c.b16 %v1133, %v1125
        %v1518 = vpack.c.b16 %v1134, %v1126
        %v1519 = vpack.c.b16 %v1135, %v1127
        %v1520 = vpack.c.b16 %v1136, %v1128
        %v1521 = vpack.c.b16 %v1145, %v1137
        %v1522 = vpack.c.b16 %v1146, %v1138
        %v1523 = vpack.c.b16 %v1147, %v1139
        %v1524 = vpack.c.b16 %v1148, %v1140
        %v1525 = vpack.c.b16 %v1149, %v1141
        %v1526 = vpack.c.b16 %v1150, %v1142
        %v1527 = vpack.c.b16 %v1151, %v1143
        %v1528 = vpack.c.b16 %v1152, %v1144
        %v1529 = vpack.c.b16 %v1161, %v1153
        %v1530 = vpack.c.b16 %v1162, %v1154
        %v1531 = vpack.c.b16 %v1163, %v1155
        %v1532 = vpack.c.b16 %v1164, %v1156
        %v1533 = vpack.c.b16 %v1165, %v1157
        %v1534 = vpack.c.b16 %v1166, %v1158
        %v1535 = vpack.c.b16 %v1167, %v1159
        %v1536 = vpack.c.b16 %v1168, %v1160
        %v1537 = vpack.c.b16 %v1177, %v1169
        %v1538 = vpack.c.b16 %v1178, %v1170
        %v1539 = vpack.c.b16 %v1179, %v1171
        %v1540 = vpack.c.b16 %v1180, %v1172
        %v1541 = vpack.c.b16 %v1181, %v1173
        %v1542 = vpack.c.b16 %v1182, %v1174
        %v1543 = vpack.c.b16 %v1183, %v1175
        %v1544 = vpack.c.b16 %v1184, %v1176
        %v1545 = vpack.c.b16 %v1193, %v1185
        %v1546 = vpack.c.b16 %v1194, %v1186
        %v1547 = vpack.c.b16 %v1195, %v1187
        %v1548 = vpack.c.b16 %v1196, %v1188
        %v1549 = vpack.c.b16 %v1197, %v1189
        %v1550 = vpack.c.b16 %v1198, %v1190
        %v1551 = vpack.c.b16 %v1199, %v1191
        %v1552 = vpack.c.b16 %v1200, %v1192
        %v1553 = vpack.c.b16 %v1209, %v1201
        %v1554 = vpack.c.b16 %v1210, %v1202
        %v1555 = vpack.c.b16 %v1211, %v1203
        %v1556 = vpack.c.b16 %v1212, %v1204
        %v1557 = vpack.c.b16 %v1213, %v1205
        %v1558 = vpack.c.b16 %v1214, %v1206
        %v1559 = vpack.c.b16 %v1215, %v1207
        %v1560 = vpack.c.b16 %v1216, %v1208
        %v1561 = vpack.c.b16 %v1225, %v1217
        %v1562 = vpack.c.b16 %v1226, %v1218
        %v1563 = vpack.c.b16 %v1227, %v1219
        %v1564 = vpack.c.b16 %v1228, %v1220
        %v1565 = vpack.c.b16 %v1229, %v1221
        %v1566 = vpack.c.b16 %v1230, %v1222
        %v1567 = vpack.c.b16 %v1231, %v1223
        %v1568 = vpack.c.b16 %v1232, %v1224
        %v1569 = vpack.c.b16 %v1241, %v1233
        %v1570 = vpack.c.b16 %v1242, %v1234
        %v1571 = vpack.c.b16 %v1243, %v1235
        %v1572 = vpack.c.b16 %v1244, %v1236
        %v1573 = vpack.c.b16 %v1245, %v1237
        %v1574 = vpack.c.b16 %v1246, %v1238
        %v1575 = vpack.c.b16 %v1247, %v1239
        %v1576 = vpack.c.b16 %v1248, %v1240
        %v1577 = vpack.c.b16 %v1257, %v1249
        %v1578 = vpack.c.b16 %v1258, %v1250
        %v1579 = vpack.c.b16 %v1259, %v1251
        %v1580 = vpack.c.b16 %v1260, %v1252
        %v1581 = vpack.c.b16 %v1261, %v1253
        %v1582 = vpack.c.b16 %v1262, %v1254
        %v1583 = vpack.c.b16 %v1263, %v1255
        %v1584 = vpack.c.b16 %v1264, %v1256
        %v1585 = vpack.c.b16 %v1273, %v1265
        %v1586 = vpack.c.b16 %v1274, %v1266
        %v1587 = vpack.c.b16 %v1275, %v1267
        %v1588 = vpack.c.b16 %v1276, %v1268
        %v1589 = vpack.c.b16 %v1277, %v1269
        %v1590 = vpack.c.b16 %v1278, %v1270
        %v1591 = vpack.c.b16 %v1279, %v1271
        %v1592 = vpack.c.b16 %v1280, %v1272
        %v1593 = vpack.c.b16 %v1289, %v1281
        %v1594 = vpack.c.b16 %v1290, %v1282
        %v1595 = vpack.c.b16 %v1291, %v1283
        %v1596 = vpack.c.b16 %v1292, %v1284
        %v1597 = vpack.c.b16 %v1293, %v1285
        %v1598 = vpack.c.b16 %v1294, %v1286
        %v1599 = vpack.c.b16 %v1295, %v1287
        %v1600 = vpack.c.b16 %v1296, %v1288
        %v1601 = vpack.c.b16 %v1305, %v1297
        %v1602 = vpack.c.b16 %v1306, %v1298
        %v1603 = vpack.c.b16 %v1307, %v1299
        %v1604 = vpack.c.b16 %v1308, %v1300
        %v1605 = vpack.c.b16 %v1309, %v1301
        %v1606 = vpack.c.b16 %v1310, %v1302
        %v1607 = vpack.c.b16 %v1311, %v1303
        %v1608 = vpack.c.b16 %v1312, %v1304
        %v1609 = vpack.c.b16 %v1321, %v1313
        %v1610 = vpack.c.b16 %v1322, %v1314
        %v1611 = vpack.c.b16 %v1323, %v1315
        %v1612 = vpack.c.b16 %v1324, %v1316
        %v1613 = vpack.c.b16 %v1325, %v1317
        %v1614 = vpack.c.b16 %v1326, %v1318
        %v1615 = vpack.c.b16 %v1327, %v1319
        %v1616 = vpack.c.b16 %v1328, %v1320
        %v1617 = vpack.c.b16 %v1337, %v1329
        %v1618 = vpack.c.b16 %v1338, %v1330
        %v1619 = vpack.c.b16 %v1339, %v1331
        %v1620 = vpack.c.b16 %v1340, %v1332
        %v1621 = vpack.c.b16 %v1341, %v1333
        %v1622 = vpack.c.b16 %v1342, %v1334
        %v1623 = vpack.c.b16 %v1343, %v1335
        %v1624 = vpack.c.b16 %v1344, %v1336
        %v1625 = vpack.c.b16 %v1353, %v1345
        %v1626 = vpack.c.b16 %v1354, %v1346
        %v1627 = vpack.c.b16 %v1355, %v1347
        %v1628 = vpack.c.b16 %v1356, %v1348
        %v1629 = vpack.c.b16 %v1357, %v1349
        %v1630 = vpack.c.b16 %v1358, %v1350
        %v1631 = vpack.c.b16 %v1359, %v1351
        %v1632 = vpack.c.b16 %v1360, %v1352
        %v1633 = vpack.c.b16 %v1369, %v1361
        %v1634 = vpack.c.b16 %v1370, %v1362
        %v1635 = vpack.c.b16 %v1371, %v1363
        %v1636 = vpack.c.b16 %v1372, %v1364
        %v1637 = vpack.c.b16 %v1373, %v1365
        %v1638 = vpack.c.b16 %v1374, %v1366
        %v1639 = vpack.c.b16 %v1375, %v1367
        %v1640 = vpack.c.b16 %v1376, %v1368
        %v1641 = vpack.c.b16 %v1385, %v1377
        %v1642 = vpack.c.b16 %v1386, %v1378
        %v1643 = vpack.c.b16 %v1387, %v1379
        %v1644 = vpack.c.b16 %v1388, %v1380
        %v1645 = vpack.c.b16 %v1389, %v1381
        %v1646 = vpack.c.b16 %v1390, %v1382
        %v1647 = vpack.c.b16 %v1391, %v1383
        %v1648 = vpack.c.b16 %v1392, %v1384
        %1905 = vmatprep.subr.bf16.mxu0 %v1394
        %1906 = vmatpush1.bf16.msra.mxu0 %v1393
        %1907 = vmatprep.subr.bf16.mxu0 %v1402
        %1908 = vmatpush1.bf16.msra.mxu0 %v1401
        %1909 = vmatprep.subr.bf16.mxu0 %v1410
        %1910 = vmatpush1.bf16.msra.mxu0 %v1409
        %1911 = vmatprep.subr.bf16.mxu0 %v1418
        %1912 = vmatpush1.bf16.msra.mxu0 %v1417
        %1913 = vmatprep.subr.bf16.mxu0 %v1426
        %1914 = vmatpush1.bf16.msra.mxu0 %v1425
        %1915 = vmatprep.subr.bf16.mxu0 %v1434
        %1916 = vmatpush1.bf16.msra.mxu0 %v1433
        %1917 = vmatprep.subr.bf16.mxu0 %v1442
        %1918 = vmatpush1.bf16.msra.mxu0 %v1441
        %1919 = vmatprep.subr.bf16.mxu0 %v1450
        %1920 = vmatpush1.bf16.msra.mxu0 %v1449
        %1921 = vmatprep.subr.bf16.mxu0 %v1458
        %1922 = vmatpush1.bf16.msra.mxu0 %v1457
        %1923 = vmatprep.subr.bf16.mxu0 %v1466
        %1924 = vmatpush1.bf16.msra.mxu0 %v1465
        %1925 = vmatprep.subr.bf16.mxu0 %v1474
        %1926 = vmatpush1.bf16.msra.mxu0 %v1473
        %1927 = vmatprep.subr.bf16.mxu0 %v1482
        %1928 = vmatpush1.bf16.msra.mxu0 %v1481
        %1929 = vmatprep.subr.bf16.mxu0 %v1490
        %1930 = vmatpush1.bf16.msra.mxu0 %v1489
        %1931 = vmatprep.subr.bf16.mxu0 %v1498
        %1932 = vmatpush1.bf16.msra.mxu0 %v1497
        %1933 = vmatprep.subr.bf16.mxu0 %v1506
        %1934 = vmatpush1.bf16.msra.mxu0 %v1505
        %1935 = vmatprep.subr.bf16.mxu0 %v1514
        %1936 = vmatpush1.bf16.msra.mxu0 %v1513
        %1937 = vmatprep.mubr.bf16.mxu0 %v618
        %1938 = vmatmul.mubr.bf16.gmra.mrb[0].mxu0 %v617
        %v1939 = vpop.f32.mrb[0].mxu0
        %v1940 = vadd.f32 0.0, %v1939
        %v1941 = vpop.f32.mrb[0].mxu0
        %v1942 = vadd.f32 0.0, %v1941
        %v1943 = vpop.f32.mrb[0].mxu0
        %v1944 = vpop.f32.mrb[0].mxu0
        %1945 = vdwg.mxu0
        %1946 = vmatprep.subr.bf16.mxu0 %v1522
        %1947 = vmatpush1.bf16.msra.mxu0 %v1521
        %1948 = vmatprep.subr.bf16.mxu0 %v1530
        %1949 = vmatpush1.bf16.msra.mxu0 %v1529
        %1950 = vmatprep.subr.bf16.mxu0 %v1538
        %1951 = vmatpush1.bf16.msra.mxu0 %v1537
        %1952 = vmatprep.subr.bf16.mxu0 %v1546
        %1953 = vmatpush1.bf16.msra.mxu0 %v1545
        %1954 = vmatprep.subr.bf16.mxu0 %v1554
        %1955 = vmatpush1.bf16.msra.mxu0 %v1553
        %1956 = vmatprep.subr.bf16.mxu0 %v1562
        %1957 = vmatpush1.bf16.msra.mxu0 %v1561
        %1958 = vmatprep.subr.bf16.mxu0 %v1570
        %1959 = vmatpush1.bf16.msra.mxu0 %v1569
        %1960 = vmatprep.subr.bf16.mxu0 %v1578
        %1961 = vmatpush1.bf16.msra.mxu0 %v1577
        %1962 = vmatprep.subr.bf16.mxu0 %v1586
        %1963 = vmatpush1.bf16.msra.mxu0 %v1585
        %1964 = vmatprep.subr.bf16.mxu0 %v1594
        %1965 = vmatpush1.bf16.msra.mxu0 %v1593
        %1966 = vmatprep.subr.bf16.mxu0 %v1602
        %1967 = vmatpush1.bf16.msra.mxu0 %v1601
        %1968 = vmatprep.subr.bf16.mxu0 %v1610
        %1969 = vmatpush1.bf16.msra.mxu0 %v1609
        %1970 = vmatprep.subr.bf16.mxu0 %v1618
        %1971 = vmatpush1.bf16.msra.mxu0 %v1617
        %1972 = vmatprep.subr.bf16.mxu0 %v1626
        %1973 = vmatpush1.bf16.msra.mxu0 %v1625
        %1974 = vmatprep.subr.bf16.mxu0 %v1634
        %1975 = vmatpush1.bf16.msra.mxu0 %v1633
        %1976 = vmatprep.subr.bf16.mxu0 %v1642
        %1977 = vmatpush1.bf16.msra.mxu0 %v1641
        %1978 = vmatprep.mubr.bf16.mxu0 %v620
        %1979 = vmatmul.mubr.bf16.gmra.mrb[0].mxu0 %v619
        %v1980 = vpop.f32.mrb[0].mxu0
        %v1981 = vadd.f32 %v1940, %v1980
        %v1982 = vpop.f32.mrb[0].mxu0
        %v1983 = vadd.f32 %v1942, %v1982
        %v1984 = vpop.f32.mrb[0].mxu0
        %v1985 = vpop.f32.mrb[0].mxu0
        %1986 = vdwg.mxu0
        %1987 = vmatprep.subr.bf16.mxu0 %v1396
        %1988 = vmatpush1.bf16.msra.mxu0 %v1395
        %1989 = vmatprep.subr.bf16.mxu0 %v1404
        %1990 = vmatpush1.bf16.msra.mxu0 %v1403
        %1991 = vmatprep.subr.bf16.mxu0 %v1412
        %1992 = vmatpush1.bf16.msra.mxu0 %v1411
        %1993 = vmatprep.subr.bf16.mxu0 %v1420
        %1994 = vmatpush1.bf16.msra.mxu0 %v1419
        %1995 = vmatprep.subr.bf16.mxu0 %v1428
        %1996 = vmatpush1.bf16.msra.mxu0 %v1427
        %1997 = vmatprep.subr.bf16.mxu0 %v1436
        %1998 = vmatpush1.bf16.msra.mxu0 %v1435
        %1999 = vmatprep.subr.bf16.mxu0 %v1444
        %2000 = vmatpush1.bf16.msra.mxu0 %v1443
        %2001 = vmatprep.subr.bf16.mxu0 %v1452
        %2002 = vmatpush1.bf16.msra.mxu0 %v1451
        %2003 = vmatprep.subr.bf16.mxu0 %v1460
        %2004 = vmatpush1.bf16.msra.mxu0 %v1459
        %2005 = vmatprep.subr.bf16.mxu0 %v1468
        %2006 = vmatpush1.bf16.msra.mxu0 %v1467
        %2007 = vmatprep.subr.bf16.mxu0 %v1476
        %2008 = vmatpush1.bf16.msra.mxu0 %v1475
        %2009 = vmatprep.subr.bf16.mxu0 %v1484
        %2010 = vmatpush1.bf16.msra.mxu0 %v1483
        %2011 = vmatprep.subr.bf16.mxu0 %v1492
        %2012 = vmatpush1.bf16.msra.mxu0 %v1491
        %2013 = vmatprep.subr.bf16.mxu0 %v1500
        %2014 = vmatpush1.bf16.msra.mxu0 %v1499
        %2015 = vmatprep.subr.bf16.mxu0 %v1508
        %2016 = vmatpush1.bf16.msra.mxu0 %v1507
        %2017 = vmatprep.subr.bf16.mxu0 %v1516
        %2018 = vmatpush1.bf16.msra.mxu0 %v1515
        %2019 = vmatprep.mubr.bf16.mxu0 %v618
        %2020 = vmatmul.mubr.bf16.gmra.mrb[0].mxu0 %v617
        %v2021 = vpop.f32.mrb[0].mxu0
        %v2022 = vadd.f32 0.0, %v2021
        %v2023 = vpop.f32.mrb[0].mxu0
        %v2024 = vadd.f32 0.0, %v2023
        %v2025 = vpop.f32.mrb[0].mxu0
        %v2026 = vpop.f32.mrb[0].mxu0
        %2027 = vdwg.mxu0
        %2028 = vmatprep.subr.bf16.mxu0 %v1524
        %2029 = vmatpush1.bf16.msra.mxu0 %v1523
        %2030 = vmatprep.subr.bf16.mxu0 %v1532
        %2031 = vmatpush1.bf16.msra.mxu0 %v1531
        %2032 = vmatprep.subr.bf16.mxu0 %v1540
        %2033 = vmatpush1.bf16.msra.mxu0 %v1539
        %2034 = vmatprep.subr.bf16.mxu0 %v1548
        %2035 = vmatpush1.bf16.msra.mxu0 %v1547
        %2036 = vmatprep.subr.bf16.mxu0 %v1556
        %2037 = vmatpush1.bf16.msra.mxu0 %v1555
        %2038 = vmatprep.subr.bf16.mxu0 %v1564
        %2039 = vmatpush1.bf16.msra.mxu0 %v1563
        %2040 = vmatprep.subr.bf16.mxu0 %v1572
        %2041 = vmatpush1.bf16.msra.mxu0 %v1571
        %2042 = vmatprep.subr.bf16.mxu0 %v1580
        %2043 = vmatpush1.bf16.msra.mxu0 %v1579
        %2044 = vmatprep.subr.bf16.mxu0 %v1588
        %2045 = vmatpush1.bf16.msra.mxu0 %v1587
        %2046 = vmatprep.subr.bf16.mxu0 %v1596
        %2047 = vmatpush1.bf16.msra.mxu0 %v1595
        %2048 = vmatprep.subr.bf16.mxu0 %v1604
        %2049 = vmatpush1.bf16.msra.mxu0 %v1603
        %2050 = vmatprep.subr.bf16.mxu0 %v1612
        %2051 = vmatpush1.bf16.msra.mxu0 %v1611
        %2052 = vmatprep.subr.bf16.mxu0 %v1620
        %2053 = vmatpush1.bf16.msra.mxu0 %v1619
        %2054 = vmatprep.subr.bf16.mxu0 %v1628
        %2055 = vmatpush1.bf16.msra.mxu0 %v1627
        %2056 = vmatprep.subr.bf16.mxu0 %v1636
        %2057 = vmatpush1.bf16.msra.mxu0 %v1635
        %2058 = vmatprep.subr.bf16.mxu0 %v1644
        %2059 = vmatpush1.bf16.msra.mxu0 %v1643
        %2060 = vmatprep.mubr.bf16.mxu0 %v620
        %2061 = vmatmul.mubr.bf16.gmra.mrb[0].mxu0 %v619
        %v2062 = vpop.f32.mrb[0].mxu0
        %v2063 = vadd.f32 %v2022, %v2062
        %v2064 = vpop.f32.mrb[0].mxu0
        %v2065 = vadd.f32 %v2024, %v2064
        %v2066 = vpop.f32.mrb[0].mxu0
        %v2067 = vpop.f32.mrb[0].mxu0
        %2068 = vdwg.mxu0
        %2069 = vmatprep.subr.bf16.mxu0 %v1398
        %2070 = vmatpush1.bf16.msra.mxu0 %v1397
        %2071 = vmatprep.subr.bf16.mxu0 %v1406
        %2072 = vmatpush1.bf16.msra.mxu0 %v1405
        %2073 = vmatprep.subr.bf16.mxu0 %v1414
        %2074 = vmatpush1.bf16.msra.mxu0 %v1413
        %2075 = vmatprep.subr.bf16.mxu0 %v1422
        %2076 = vmatpush1.bf16.msra.mxu0 %v1421
        %2077 = vmatprep.subr.bf16.mxu0 %v1430
        %2078 = vmatpush1.bf16.msra.mxu0 %v1429
        %2079 = vmatprep.subr.bf16.mxu0 %v1438
        %2080 = vmatpush1.bf16.msra.mxu0 %v1437
        %2081 = vmatprep.subr.bf16.mxu0 %v1446
        %2082 = vmatpush1.bf16.msra.mxu0 %v1445
        %2083 = vmatprep.subr.bf16.mxu0 %v1454
        %2084 = vmatpush1.bf16.msra.mxu0 %v1453
        %2085 = vmatprep.subr.bf16.mxu0 %v1462
        %2086 = vmatpush1.bf16.msra.mxu0 %v1461
        %2087 = vmatprep.subr.bf16.mxu0 %v1470
        %2088 = vmatpush1.bf16.msra.mxu0 %v1469
        %2089 = vmatprep.subr.bf16.mxu0 %v1478
        %2090 = vmatpush1.bf16.msra.mxu0 %v1477
        %2091 = vmatprep.subr.bf16.mxu0 %v1486
        %2092 = vmatpush1.bf16.msra.mxu0 %v1485
        %2093 = vmatprep.subr.bf16.mxu0 %v1494
        %2094 = vmatpush1.bf16.msra.mxu0 %v1493
        %2095 = vmatprep.subr.bf16.mxu0 %v1502
        %2096 = vmatpush1.bf16.msra.mxu0 %v1501
        %2097 = vmatprep.subr.bf16.mxu0 %v1510
        %2098 = vmatpush1.bf16.msra.mxu0 %v1509
        %2099 = vmatprep.subr.bf16.mxu0 %v1518
        %2100 = vmatpush1.bf16.msra.mxu0 %v1517
        %2101 = vmatprep.mubr.bf16.mxu0 %v618
        %2102 = vmatmul.mubr.bf16.gmra.mrb[0].mxu0 %v617
        %v2103 = vpop.f32.mrb[0].mxu0
        %v2104 = vadd.f32 0.0, %v2103
        %v2105 = vpop.f32.mrb[0].mxu0
        %v2106 = vadd.f32 0.0, %v2105
        %v2107 = vpop.f32.mrb[0].mxu0
        %v2108 = vpop.f32.mrb[0].mxu0
        %2109 = vdwg.mxu0
        %2110 = vmatprep.subr.bf16.mxu0 %v1526
        %2111 = vmatpush1.bf16.msra.mxu0 %v1525
        %2112 = vmatprep.subr.bf16.mxu0 %v1534
        %2113 = vmatpush1.bf16.msra.mxu0 %v1533
        %2114 = vmatprep.subr.bf16.mxu0 %v1542
        %2115 = vmatpush1.bf16.msra.mxu0 %v1541
        %2116 = vmatprep.subr.bf16.mxu0 %v1550
        %2117 = vmatpush1.bf16.msra.mxu0 %v1549
        %2118 = vmatprep.subr.bf16.mxu0 %v1558
        %2119 = vmatpush1.bf16.msra.mxu0 %v1557
        %2120 = vmatprep.subr.bf16.mxu0 %v1566
        %2121 = vmatpush1.bf16.msra.mxu0 %v1565
        %2122 = vmatprep.subr.bf16.mxu0 %v1574
        %2123 = vmatpush1.bf16.msra.mxu0 %v1573
        %2124 = vmatprep.subr.bf16.mxu0 %v1582
        %2125 = vmatpush1.bf16.msra.mxu0 %v1581
        %2126 = vmatprep.subr.bf16.mxu0 %v1590
        %2127 = vmatpush1.bf16.msra.mxu0 %v1589
        %2128 = vmatprep.subr.bf16.mxu0 %v1598
        %2129 = vmatpush1.bf16.msra.mxu0 %v1597
        %2130 = vmatprep.subr.bf16.mxu0 %v1606
        %2131 = vmatpush1.bf16.msra.mxu0 %v1605
        %2132 = vmatprep.subr.bf16.mxu0 %v1614
        %2133 = vmatpush1.bf16.msra.mxu0 %v1613
        %2134 = vmatprep.subr.bf16.mxu0 %v1622
        %2135 = vmatpush1.bf16.msra.mxu0 %v1621
        %2136 = vmatprep.subr.bf16.mxu0 %v1630
        %2137 = vmatpush1.bf16.msra.mxu0 %v1629
        %2138 = vmatprep.subr.bf16.mxu0 %v1638
        %2139 = vmatpush1.bf16.msra.mxu0 %v1637
        %2140 = vmatprep.subr.bf16.mxu0 %v1646
        %2141 = vmatpush1.bf16.msra.mxu0 %v1645
        %2142 = vmatprep.mubr.bf16.mxu0 %v620
        %2143 = vmatmul.mubr.bf16.gmra.mrb[0].mxu0 %v619
        %v2144 = vpop.f32.mrb[0].mxu0
        %v2145 = vadd.f32 %v2104, %v2144
        %v2146 = vpop.f32.mrb[0].mxu0
        %v2147 = vadd.f32 %v2106, %v2146
        %v2148 = vpop.f32.mrb[0].mxu0
        %v2149 = vpop.f32.mrb[0].mxu0
        %2150 = vdwg.mxu0
        %2151 = vmatprep.subr.bf16.mxu0 %v1400
        %2152 = vmatpush1.bf16.msra.mxu0 %v1399
        %2153 = vmatprep.subr.bf16.mxu0 %v1408
        %2154 = vmatpush1.bf16.msra.mxu0 %v1407
        %2155 = vmatprep.subr.bf16.mxu0 %v1416
        %2156 = vmatpush1.bf16.msra.mxu0 %v1415
        %2157 = vmatprep.subr.bf16.mxu0 %v1424
        %2158 = vmatpush1.bf16.msra.mxu0 %v1423
        %2159 = vmatprep.subr.bf16.mxu0 %v1432
        %2160 = vmatpush1.bf16.msra.mxu0 %v1431
        %2161 = vmatprep.subr.bf16.mxu0 %v1440
        %2162 = vmatpush1.bf16.msra.mxu0 %v1439
        %2163 = vmatprep.subr.bf16.mxu0 %v1448
        %2164 = vmatpush1.bf16.msra.mxu0 %v1447
        %2165 = vmatprep.subr.bf16.mxu0 %v1456
        %2166 = vmatpush1.bf16.msra.mxu0 %v1455
        %2167 = vmatprep.subr.bf16.mxu0 %v1464
        %2168 = vmatpush1.bf16.msra.mxu0 %v1463
        %2169 = vmatprep.subr.bf16.mxu0 %v1472
        %2170 = vmatpush1.bf16.msra.mxu0 %v1471
        %2171 = vmatprep.subr.bf16.mxu0 %v1480
        %2172 = vmatpush1.bf16.msra.mxu0 %v1479
        %2173 = vmatprep.subr.bf16.mxu0 %v1488
        %2174 = vmatpush1.bf16.msra.mxu0 %v1487
        %2175 = vmatprep.subr.bf16.mxu0 %v1496
        %2176 = vmatpush1.bf16.msra.mxu0 %v1495
        %2177 = vmatprep.subr.bf16.mxu0 %v1504
        %2178 = vmatpush1.bf16.msra.mxu0 %v1503
        %2179 = vmatprep.subr.bf16.mxu0 %v1512
        %2180 = vmatpush1.bf16.msra.mxu0 %v1511
        %2181 = vmatprep.subr.bf16.mxu0 %v1520
        %2182 = vmatpush1.bf16.msra.mxu0 %v1519
        %2183 = vmatprep.mubr.bf16.mxu0 %v618
        %2184 = vmatmul.mubr.bf16.gmra.mrb[0].mxu0 %v617
        %v2185 = vpop.f32.mrb[0].mxu0
        %v2186 = vadd.f32 0.0, %v2185
        %v2187 = vpop.f32.mrb[0].mxu0
        %v2188 = vadd.f32 0.0, %v2187
        %v2189 = vpop.f32.mrb[0].mxu0
        %v2190 = vpop.f32.mrb[0].mxu0
        %2191 = vdwg.mxu0
        %2192 = vmatprep.subr.bf16.mxu0 %v1528
        %2193 = vmatpush1.bf16.msra.mxu0 %v1527
        %2194 = vmatprep.subr.bf16.mxu0 %v1536
        %2195 = vmatpush1.bf16.msra.mxu0 %v1535
        %2196 = vmatprep.subr.bf16.mxu0 %v1544
        %2197 = vmatpush1.bf16.msra.mxu0 %v1543
        %2198 = vmatprep.subr.bf16.mxu0 %v1552
        %2199 = vmatpush1.bf16.msra.mxu0 %v1551
        %2200 = vmatprep.subr.bf16.mxu0 %v1560
        %2201 = vmatpush1.bf16.msra.mxu0 %v1559
        %2202 = vmatprep.subr.bf16.mxu0 %v1568
        %2203 = vmatpush1.bf16.msra.mxu0 %v1567
        %2204 = vmatprep.subr.bf16.mxu0 %v1576
        %2205 = vmatpush1.bf16.msra.mxu0 %v1575
        %2206 = vmatprep.subr.bf16.mxu0 %v1584
        %2207 = vmatpush1.bf16.msra.mxu0 %v1583
        %2208 = vmatprep.subr.bf16.mxu0 %v1592
        %2209 = vmatpush1.bf16.msra.mxu0 %v1591
        %2210 = vmatprep.subr.bf16.mxu0 %v1600
        %2211 = vmatpush1.bf16.msra.mxu0 %v1599
        %2212 = vmatprep.subr.bf16.mxu0 %v1608
        %2213 = vmatpush1.bf16.msra.mxu0 %v1607
        %2214 = vmatprep.subr.bf16.mxu0 %v1616
        %2215 = vmatpush1.bf16.msra.mxu0 %v1615
        %2216 = vmatprep.subr.bf16.mxu0 %v1624
        %2217 = vmatpush1.bf16.msra.mxu0 %v1623
        %2218 = vmatprep.subr.bf16.mxu0 %v1632
        %2219 = vmatpush1.bf16.msra.mxu0 %v1631
        %2220 = vmatprep.subr.bf16.mxu0 %v1640
        %2221 = vmatpush1.bf16.msra.mxu0 %v1639
        %2222 = vmatprep.subr.bf16.mxu0 %v1648
        %2223 = vmatpush1.bf16.msra.mxu0 %v1647
        %2224 = vmatprep.mubr.bf16.mxu0 %v620
        %2225 = vmatmul.mubr.bf16.gmra.mrb[0].mxu0 %v619
        %v2226 = vpop.f32.mrb[0].mxu0
        %v2227 = vadd.f32 %v2186, %v2226
        %v2228 = vpop.f32.mrb[0].mxu0
        %v2229 = vadd.f32 %v2188, %v2228
        %v2230 = vpop.f32.mrb[0].mxu0
        %v2231 = vpop.f32.mrb[0].mxu0
        %2232 = vdwg.mxu0
        %v2233 = vadd.f32 %v345, %v1981
        %v2234 = vadd.f32 %v346, %v1983
        %v2235 = vadd.f32 %v347, %v2063
        %v2236 = vadd.f32 %v348, %v2065
        %v2237 = vadd.f32 %v349, %v2145
        %v2238 = vadd.f32 %v350, %v2147
        %v2239 = vadd.f32 %v351, %v2227
        %v2240 = vadd.f32 %v352, %v2229
        %2241 = vst [vmem:[#allocation2] sm:$0xff] %v2233
        %2242 = vst [vmem:[#allocation2 + $0x8] sm:$0xff] %v2234
        %2243 = vst [vmem:[#allocation2 + $0x10] sm:$0xff] %v2235
        %2244 = vst [vmem:[#allocation2 + $0x18] sm:$0xff] %v2236
        %2245 = vst [vmem:[#allocation2 + $0x20] sm:$0xff] %v2237
        %2246 = vst [vmem:[#allocation2 + $0x28] sm:$0xff] %v2238
        %2247 = vst [vmem:[#allocation2 + $0x30] sm:$0xff] %v2239
        %2248 = vst [vmem:[#allocation2 + $0x38] sm:$0xff] %v2240
        %p2249 = scmp.eq.s32.totalorder %s29, 1
        // Predicated region
        $region65: #{tpu_custom_call.1} parent=39 // pred_check
          %p2250 = pneg %p2249
        $region66: #{tpu_custom_call.1} parent=39 // pred_check_branch
          %2252 = sbr.rel (%p2250) target = $region68
        $region67: #{tpu_custom_call.1} parent=39 // pred_region
          %v2253 = vld [vmem:[#allocation2] sm:$0xff]
          %v2254 = vld [vmem:[#allocation2 + $0x8] sm:$0xff]
          %v2255 = vld [vmem:[#allocation2 + $0x10] sm:$0xff]
          %v2256 = vld [vmem:[#allocation2 + $0x18] sm:$0xff]
          %v2257 = vld [vmem:[#allocation2 + $0x20] sm:$0xff]
          %v2258 = vld [vmem:[#allocation2 + $0x28] sm:$0xff]
          %v2259 = vld [vmem:[#allocation2 + $0x30] sm:$0xff]
          %v2260 = vld [vmem:[#allocation2 + $0x38] sm:$0xff]
          %v2261 = vld [vmem:[#allocation8] sm:$0xff]
          %v2263 = vlaneseq
          %v2264 = vshrl.u32 %v2263, 7
          %v2265 = vsub.s32 0, %v2264
          %v2266 = vrot.slane %v2261, %v2265
          %v2267 = vlaneseq
          %v2268 = vshrl.u32 %v2267, 7
          %v2269 = vsub.s32 1, %v2268
          %v2270 = vrot.slane %v2261, %v2269
          %v2271 = vlaneseq
          %v2272 = vshrl.u32 %v2271, 7
          %v2273 = vsub.s32 2, %v2272
          %v2274 = vrot.slane %v2261, %v2273
          %v2275 = vlaneseq
          %v2276 = vshrl.u32 %v2275, 7
          %v2277 = vsub.s32 3, %v2276
          %v2278 = vrot.slane %v2261, %v2277
          %v2279 = vlaneseq
          %v2280 = vshrl.u32 %v2279, 7
          %v2281 = vsub.s32 4, %v2280
          %v2282 = vrot.slane %v2261, %v2281
          %v2283 = vlaneseq
          %v2284 = vshrl.u32 %v2283, 7
          %v2285 = vsub.s32 5, %v2284
          %v2286 = vrot.slane %v2261, %v2285
          %v2287 = vlaneseq
          %v2288 = vshrl.u32 %v2287, 7
          %v2289 = vsub.s32 6, %v2288
          %v2290 = vrot.slane %v2261, %v2289
          %v2291 = vlaneseq
          %v2292 = vshrl.u32 %v2291, 7
          %v2293 = vsub.s32 7, %v2292
          %v2294 = vrot.slane %v2261, %v2293
          %v2303 = vadd.f32 %v2253, %v2266
          %v2304 = vadd.f32 %v2254, %v2270
          %v2305 = vadd.f32 %v2255, %v2274
          %v2306 = vadd.f32 %v2256, %v2278
          %v2307 = vadd.f32 %v2257, %v2282
          %v2308 = vadd.f32 %v2258, %v2286
          %v2309 = vadd.f32 %v2259, %v2290
          %v2310 = vadd.f32 %v2260, %v2294
          %v2311 = vpack.c.bf16 %v2303, %v2303
          %v2312 = vpack.c.bf16 %v2304, %v2304
          %v2313 = vpack.c.bf16 %v2305, %v2305
          %v2314 = vpack.c.bf16 %v2306, %v2306
          %v2315 = vpack.c.bf16 %v2307, %v2307
          %v2316 = vpack.c.bf16 %v2308, %v2308
          %v2317 = vpack.c.bf16 %v2309, %v2309
          %v2318 = vpack.c.bf16 %v2310, %v2310
          %v2319 = vld [vmem:[#allocation9] sm:$0xf]
          %v2320 = vld [vmem:[#allocation9 + $0x4] sm:$0xf]
          %v2321 = vld [vmem:[#allocation9 + $0x8] sm:$0xf]
          %v2322 = vld [vmem:[#allocation9 + $0xc] sm:$0xf]
          %v2323 = vld [vmem:[#allocation9 + $0x10] sm:$0xf]
          %v2324 = vld [vmem:[#allocation9 + $0x14] sm:$0xf]
          %v2325 = vld [vmem:[#allocation9 + $0x18] sm:$0xf]
          %v2326 = vld [vmem:[#allocation9 + $0x1c] sm:$0xf]
          %v2327 = vld [vmem:[#allocation9 + $0x20] sm:$0xf]
          %v2328 = vld [vmem:[#allocation9 + $0x24] sm:$0xf]
          %v2329 = vld [vmem:[#allocation9 + $0x28] sm:$0xf]
          %v2330 = vld [vmem:[#allocation9 + $0x2c] sm:$0xf]
          %v2331 = vld [vmem:[#allocation9 + $0x30] sm:$0xf]
          %v2332 = vld [vmem:[#allocation9 + $0x34] sm:$0xf]
          %v2333 = vld [vmem:[#allocation9 + $0x38] sm:$0xf]
          %v2334 = vld [vmem:[#allocation9 + $0x3c] sm:$0xf]
          %v2335 = vld [vmem:[#allocation9 + $0x40] sm:$0xf]
          %v2336 = vld [vmem:[#allocation9 + $0x44] sm:$0xf]
          %v2337 = vld [vmem:[#allocation9 + $0x48] sm:$0xf]
          %v2338 = vld [vmem:[#allocation9 + $0x4c] sm:$0xf]
          %v2339 = vld [vmem:[#allocation9 + $0x50] sm:$0xf]
          %v2340 = vld [vmem:[#allocation9 + $0x54] sm:$0xf]
          %v2341 = vld [vmem:[#allocation9 + $0x58] sm:$0xf]
          %v2342 = vld [vmem:[#allocation9 + $0x5c] sm:$0xf]
          %v2343 = vld [vmem:[#allocation9 + $0x60] sm:$0xf]
          %v2344 = vld [vmem:[#allocation9 + $0x64] sm:$0xf]
          %v2345 = vld [vmem:[#allocation9 + $0x68] sm:$0xf]
          %v2346 = vld [vmem:[#allocation9 + $0x6c] sm:$0xf]
          %v2347 = vld [vmem:[#allocation9 + $0x70] sm:$0xf]
          %v2348 = vld [vmem:[#allocation9 + $0x74] sm:$0xf]
          %v2349 = vld [vmem:[#allocation9 + $0x78] sm:$0xf]
          %v2350 = vld [vmem:[#allocation9 + $0x7c] sm:$0xf]
          %v2351 = vld [vmem:[#allocation9 + $0x80] sm:$0xf]
          %v2352 = vld [vmem:[#allocation9 + $0x84] sm:$0xf]
          %v2353 = vld [vmem:[#allocation9 + $0x88] sm:$0xf]
          %v2354 = vld [vmem:[#allocation9 + $0x8c] sm:$0xf]
          %v2355 = vld [vmem:[#allocation9 + $0x90] sm:$0xf]
          %v2356 = vld [vmem:[#allocation9 + $0x94] sm:$0xf]
          %v2357 = vld [vmem:[#allocation9 + $0x98] sm:$0xf]
          %v2358 = vld [vmem:[#allocation9 + $0x9c] sm:$0xf]
          %v2359 = vld [vmem:[#allocation9 + $0xa0] sm:$0xf]
          %v2360 = vld [vmem:[#allocation9 + $0xa4] sm:$0xf]
          %v2361 = vld [vmem:[#allocation9 + $0xa8] sm:$0xf]
          %v2362 = vld [vmem:[#allocation9 + $0xac] sm:$0xf]
          %v2363 = vld [vmem:[#allocation9 + $0xb0] sm:$0xf]
          %v2364 = vld [vmem:[#allocation9 + $0xb4] sm:$0xf]
          %v2365 = vld [vmem:[#allocation9 + $0xb8] sm:$0xf]
          %v2366 = vld [vmem:[#allocation9 + $0xbc] sm:$0xf]
          %v2367 = vld [vmem:[#allocation9 + $0xc0] sm:$0xf]
          %v2368 = vld [vmem:[#allocation9 + $0xc4] sm:$0xf]
          %v2369 = vld [vmem:[#allocation9 + $0xc8] sm:$0xf]
          %v2370 = vld [vmem:[#allocation9 + $0xcc] sm:$0xf]
          %v2371 = vld [vmem:[#allocation9 + $0xd0] sm:$0xf]
          %v2372 = vld [vmem:[#allocation9 + $0xd4] sm:$0xf]
          %v2373 = vld [vmem:[#allocation9 + $0xd8] sm:$0xf]
          %v2374 = vld [vmem:[#allocation9 + $0xdc] sm:$0xf]
          %v2375 = vld [vmem:[#allocation9 + $0xe0] sm:$0xf]
          %v2376 = vld [vmem:[#allocation9 + $0xe4] sm:$0xf]
          %v2377 = vld [vmem:[#allocation9 + $0xe8] sm:$0xf]
          %v2378 = vld [vmem:[#allocation9 + $0xec] sm:$0xf]
          %v2379 = vld [vmem:[#allocation9 + $0xf0] sm:$0xf]
          %v2380 = vld [vmem:[#allocation9 + $0xf4] sm:$0xf]
          %v2381 = vld [vmem:[#allocation9 + $0xf8] sm:$0xf]
          %v2382 = vld [vmem:[#allocation9 + $0xfc] sm:$0xf]
          %v2383 = vld [vmem:[#allocation9 + $0x100] sm:$0xf]
          %v2384 = vld [vmem:[#allocation9 + $0x104] sm:$0xf]
          %v2385 = vld [vmem:[#allocation9 + $0x108] sm:$0xf]
          %v2386 = vld [vmem:[#allocation9 + $0x10c] sm:$0xf]
          %v2387 = vld [vmem:[#allocation9 + $0x110] sm:$0xf]
          %v2388 = vld [vmem:[#allocation9 + $0x114] sm:$0xf]
          %v2389 = vld [vmem:[#allocation9 + $0x118] sm:$0xf]
          %v2390 = vld [vmem:[#allocation9 + $0x11c] sm:$0xf]
          %v2391 = vld [vmem:[#allocation9 + $0x120] sm:$0xf]
          %v2392 = vld [vmem:[#allocation9 + $0x124] sm:$0xf]
          %v2393 = vld [vmem:[#allocation9 + $0x128] sm:$0xf]
          %v2394 = vld [vmem:[#allocation9 + $0x12c] sm:$0xf]
          %v2395 = vld [vmem:[#allocation9 + $0x130] sm:$0xf]
          %v2396 = vld [vmem:[#allocation9 + $0x134] sm:$0xf]
          %v2397 = vld [vmem:[#allocation9 + $0x138] sm:$0xf]
          %v2398 = vld [vmem:[#allocation9 + $0x13c] sm:$0xf]
          %v2399 = vld [vmem:[#allocation9 + $0x140] sm:$0xf]
          %v2400 = vld [vmem:[#allocation9 + $0x144] sm:$0xf]
          %v2401 = vld [vmem:[#allocation9 + $0x148] sm:$0xf]
          %v2402 = vld [vmem:[#allocation9 + $0x14c] sm:$0xf]
          %v2403 = vld [vmem:[#allocation9 + $0x150] sm:$0xf]
          %v2404 = vld [vmem:[#allocation9 + $0x154] sm:$0xf]
          %v2405 = vld [vmem:[#allocation9 + $0x158] sm:$0xf]
          %v2406 = vld [vmem:[#allocation9 + $0x15c] sm:$0xf]
          %v2407 = vld [vmem:[#allocation9 + $0x160] sm:$0xf]
          %v2408 = vld [vmem:[#allocation9 + $0x164] sm:$0xf]
          %v2409 = vld [vmem:[#allocation9 + $0x168] sm:$0xf]
          %v2410 = vld [vmem:[#allocation9 + $0x16c] sm:$0xf]
          %v2411 = vld [vmem:[#allocation9 + $0x170] sm:$0xf]
          %v2412 = vld [vmem:[#allocation9 + $0x174] sm:$0xf]
          %v2413 = vld [vmem:[#allocation9 + $0x178] sm:$0xf]
          %v2414 = vld [vmem:[#allocation9 + $0x17c] sm:$0xf]
          %v2415 = vld [vmem:[#allocation9 + $0x180] sm:$0xf]
          %v2416 = vld [vmem:[#allocation9 + $0x184] sm:$0xf]
          %v2417 = vld [vmem:[#allocation9 + $0x188] sm:$0xf]
          %v2418 = vld [vmem:[#allocation9 + $0x18c] sm:$0xf]
          %v2419 = vld [vmem:[#allocation9 + $0x190] sm:$0xf]
          %v2420 = vld [vmem:[#allocation9 + $0x194] sm:$0xf]
          %v2421 = vld [vmem:[#allocation9 + $0x198] sm:$0xf]
          %v2422 = vld [vmem:[#allocation9 + $0x19c] sm:$0xf]
          %v2423 = vld [vmem:[#allocation9 + $0x1a0] sm:$0xf]
          %v2424 = vld [vmem:[#allocation9 + $0x1a4] sm:$0xf]
          %v2425 = vld [vmem:[#allocation9 + $0x1a8] sm:$0xf]
          %v2426 = vld [vmem:[#allocation9 + $0x1ac] sm:$0xf]
          %v2427 = vld [vmem:[#allocation9 + $0x1b0] sm:$0xf]
          %v2428 = vld [vmem:[#allocation9 + $0x1b4] sm:$0xf]
          %v2429 = vld [vmem:[#allocation9 + $0x1b8] sm:$0xf]
          %v2430 = vld [vmem:[#allocation9 + $0x1bc] sm:$0xf]
          %v2431 = vld [vmem:[#allocation9 + $0x1c0] sm:$0xf]
          %v2432 = vld [vmem:[#allocation9 + $0x1c4] sm:$0xf]
          %v2433 = vld [vmem:[#allocation9 + $0x1c8] sm:$0xf]
          %v2434 = vld [vmem:[#allocation9 + $0x1cc] sm:$0xf]
          %v2435 = vld [vmem:[#allocation9 + $0x1d0] sm:$0xf]
          %v2436 = vld [vmem:[#allocation9 + $0x1d4] sm:$0xf]
          %v2437 = vld [vmem:[#allocation9 + $0x1d8] sm:$0xf]
          %v2438 = vld [vmem:[#allocation9 + $0x1dc] sm:$0xf]
          %v2439 = vld [vmem:[#allocation9 + $0x1e0] sm:$0xf]
          %v2440 = vld [vmem:[#allocation9 + $0x1e4] sm:$0xf]
          %v2441 = vld [vmem:[#allocation9 + $0x1e8] sm:$0xf]
          %v2442 = vld [vmem:[#allocation9 + $0x1ec] sm:$0xf]
          %v2443 = vld [vmem:[#allocation9 + $0x1f0] sm:$0xf]
          %v2444 = vld [vmem:[#allocation9 + $0x1f4] sm:$0xf]
          %v2445 = vld [vmem:[#allocation9 + $0x1f8] sm:$0xf]
          %v2446 = vld [vmem:[#allocation9 + $0x1fc] sm:$0xf]
          %v2447 = vld [vmem:[#allocation11] sm:$0x1]
          %v2449 = vlaneseq
          %v2450 = vshrl.u32 %v2449, 7
          %v2451 = vsub.s32 0, %v2450
          %v2452 = vrot.slane %v2447, %v2451
          %v2582 = vunpack.c.l.b16 %v2319
          %v2583 = vunpack.c.l.b16 %v2320
          %v2584 = vunpack.c.l.b16 %v2321
          %v2585 = vunpack.c.l.b16 %v2322
          %v2586 = vunpack.c.l.b16 %v2323
          %v2587 = vunpack.c.l.b16 %v2324
          %v2588 = vunpack.c.l.b16 %v2325
          %v2589 = vunpack.c.l.b16 %v2326
          %v2590 = vunpack.c.l.b16 %v2327
          %v2591 = vunpack.c.l.b16 %v2328
          %v2592 = vunpack.c.l.b16 %v2329
          %v2593 = vunpack.c.l.b16 %v2330
          %v2594 = vunpack.c.l.b16 %v2331
          %v2595 = vunpack.c.l.b16 %v2332
          %v2596 = vunpack.c.l.b16 %v2333
          %v2597 = vunpack.c.l.b16 %v2334
          %v2598 = vunpack.c.l.b16 %v2335
          %v2599 = vunpack.c.l.b16 %v2336
          %v2600 = vunpack.c.l.b16 %v2337
          %v2601 = vunpack.c.l.b16 %v2338
          %v2602 = vunpack.c.l.b16 %v2339
          %v2603 = vunpack.c.l.b16 %v2340
          %v2604 = vunpack.c.l.b16 %v2341
          %v2605 = vunpack.c.l.b16 %v2342
          %v2606 = vunpack.c.l.b16 %v2343
          %v2607 = vunpack.c.l.b16 %v2344
          %v2608 = vunpack.c.l.b16 %v2345
          %v2609 = vunpack.c.l.b16 %v2346
          %v2610 = vunpack.c.l.b16 %v2347
          %v2611 = vunpack.c.l.b16 %v2348
          %v2612 = vunpack.c.l.b16 %v2349
          %v2613 = vunpack.c.l.b16 %v2350
          %v2614 = vunpack.c.l.b16 %v2351
          %v2615 = vunpack.c.l.b16 %v2352
          %v2616 = vunpack.c.l.b16 %v2353
          %v2617 = vunpack.c.l.b16 %v2354
          %v2618 = vunpack.c.l.b16 %v2355
          %v2619 = vunpack.c.l.b16 %v2356
          %v2620 = vunpack.c.l.b16 %v2357
          %v2621 = vunpack.c.l.b16 %v2358
          %v2622 = vunpack.c.l.b16 %v2359
          %v2623 = vunpack.c.l.b16 %v2360
          %v2624 = vunpack.c.l.b16 %v2361
          %v2625 = vunpack.c.l.b16 %v2362
          %v2626 = vunpack.c.l.b16 %v2363
          %v2627 = vunpack.c.l.b16 %v2364
          %v2628 = vunpack.c.l.b16 %v2365
          %v2629 = vunpack.c.l.b16 %v2366
          %v2630 = vunpack.c.l.b16 %v2367
          %v2631 = vunpack.c.l.b16 %v2368
          %v2632 = vunpack.c.l.b16 %v2369
          %v2633 = vunpack.c.l.b16 %v2370
          %v2634 = vunpack.c.l.b16 %v2371
          %v2635 = vunpack.c.l.b16 %v2372
          %v2636 = vunpack.c.l.b16 %v2373
          %v2637 = vunpack.c.l.b16 %v2374
          %v2638 = vunpack.c.l.b16 %v2375
          %v2639 = vunpack.c.l.b16 %v2376
          %v2640 = vunpack.c.l.b16 %v2377
          %v2641 = vunpack.c.l.b16 %v2378
          %v2642 = vunpack.c.l.b16 %v2379
          %v2643 = vunpack.c.l.b16 %v2380
          %v2644 = vunpack.c.l.b16 %v2381
          %v2645 = vunpack.c.l.b16 %v2382
          %v2646 = vunpack.c.l.b16 %v2383
          %v2647 = vunpack.c.l.b16 %v2384
          %v2648 = vunpack.c.l.b16 %v2385
          %v2649 = vunpack.c.l.b16 %v2386
          %v2650 = vunpack.c.l.b16 %v2387
          %v2651 = vunpack.c.l.b16 %v2388
          %v2652 = vunpack.c.l.b16 %v2389
          %v2653 = vunpack.c.l.b16 %v2390
          %v2654 = vunpack.c.l.b16 %v2391
          %v2655 = vunpack.c.l.b16 %v2392
          %v2656 = vunpack.c.l.b16 %v2393
          %v2657 = vunpack.c.l.b16 %v2394
          %v2658 = vunpack.c.l.b16 %v2395
          %v2659 = vunpack.c.l.b16 %v2396
          %v2660 = vunpack.c.l.b16 %v2397
          %v2661 = vunpack.c.l.b16 %v2398
          %v2662 = vunpack.c.l.b16 %v2399
          %v2663 = vunpack.c.l.b16 %v2400
          %v2664 = vunpack.c.l.b16 %v2401
          %v2665 = vunpack.c.l.b16 %v2402
          %v2666 = vunpack.c.l.b16 %v2403
          %v2667 = vunpack.c.l.b16 %v2404
          %v2668 = vunpack.c.l.b16 %v2405
          %v2669 = vunpack.c.l.b16 %v2406
          %v2670 = vunpack.c.l.b16 %v2407
          %v2671 = vunpack.c.l.b16 %v2408
          %v2672 = vunpack.c.l.b16 %v2409
          %v2673 = vunpack.c.l.b16 %v2410
          %v2674 = vunpack.c.l.b16 %v2411
          %v2675 = vunpack.c.l.b16 %v2412
          %v2676 = vunpack.c.l.b16 %v2413
          %v2677 = vunpack.c.l.b16 %v2414
          %v2678 = vunpack.c.l.b16 %v2415
          %v2679 = vunpack.c.l.b16 %v2416
          %v2680 = vunpack.c.l.b16 %v2417
          %v2681 = vunpack.c.l.b16 %v2418
          %v2682 = vunpack.c.l.b16 %v2419
          %v2683 = vunpack.c.l.b16 %v2420
          %v2684 = vunpack.c.l.b16 %v2421
          %v2685 = vunpack.c.l.b16 %v2422
          %v2686 = vunpack.c.l.b16 %v2423
          %v2687 = vunpack.c.l.b16 %v2424
          %v2688 = vunpack.c.l.b16 %v2425
          %v2689 = vunpack.c.l.b16 %v2426
          %v2690 = vunpack.c.l.b16 %v2427
          %v2691 = vunpack.c.l.b16 %v2428
          %v2692 = vunpack.c.l.b16 %v2429
          %v2693 = vunpack.c.l.b16 %v2430
          %v2694 = vunpack.c.l.b16 %v2431
          %v2695 = vunpack.c.l.b16 %v2432
          %v2696 = vunpack.c.l.b16 %v2433
          %v2697 = vunpack.c.l.b16 %v2434
          %v2698 = vunpack.c.l.b16 %v2435
          %v2699 = vunpack.c.l.b16 %v2436
          %v2700 = vunpack.c.l.b16 %v2437
          %v2701 = vunpack.c.l.b16 %v2438
          %v2702 = vunpack.c.l.b16 %v2439
          %v2703 = vunpack.c.l.b16 %v2440
          %v2704 = vunpack.c.l.b16 %v2441
          %v2705 = vunpack.c.l.b16 %v2442
          %v2706 = vunpack.c.l.b16 %v2443
          %v2707 = vunpack.c.l.b16 %v2444
          %v2708 = vunpack.c.l.b16 %v2445
          %v2709 = vunpack.c.l.b16 %v2446
          %v2710 = vpack.c.b16 %v2583, %v2582
          %v2711 = vpack.c.b16 %v2585, %v2584
          %v2712 = vpack.c.b16 %v2587, %v2586
          %v2713 = vpack.c.b16 %v2589, %v2588
          %v2714 = vpack.c.b16 %v2591, %v2590
          %v2715 = vpack.c.b16 %v2593, %v2592
          %v2716 = vpack.c.b16 %v2595, %v2594
          %v2717 = vpack.c.b16 %v2597, %v2596
          %v2718 = vpack.c.b16 %v2599, %v2598
          %v2719 = vpack.c.b16 %v2601, %v2600
          %v2720 = vpack.c.b16 %v2603, %v2602
          %v2721 = vpack.c.b16 %v2605, %v2604
          %v2722 = vpack.c.b16 %v2607, %v2606
          %v2723 = vpack.c.b16 %v2609, %v2608
          %v2724 = vpack.c.b16 %v2611, %v2610
          %v2725 = vpack.c.b16 %v2613, %v2612
          %v2726 = vpack.c.b16 %v2615, %v2614
          %v2727 = vpack.c.b16 %v2617, %v2616
          %v2728 = vpack.c.b16 %v2619, %v2618
          %v2729 = vpack.c.b16 %v2621, %v2620
          %v2730 = vpack.c.b16 %v2623, %v2622
          %v2731 = vpack.c.b16 %v2625, %v2624
          %v2732 = vpack.c.b16 %v2627, %v2626
          %v2733 = vpack.c.b16 %v2629, %v2628
          %v2734 = vpack.c.b16 %v2631, %v2630
          %v2735 = vpack.c.b16 %v2633, %v2632
          %v2736 = vpack.c.b16 %v2635, %v2634
          %v2737 = vpack.c.b16 %v2637, %v2636
          %v2738 = vpack.c.b16 %v2639, %v2638
          %v2739 = vpack.c.b16 %v2641, %v2640
          %v2740 = vpack.c.b16 %v2643, %v2642
          %v2741 = vpack.c.b16 %v2645, %v2644
          %v2742 = vpack.c.b16 %v2647, %v2646
          %v2743 = vpack.c.b16 %v2649, %v2648
          %v2744 = vpack.c.b16 %v2651, %v2650
          %v2745 = vpack.c.b16 %v2653, %v2652
          %v2746 = vpack.c.b16 %v2655, %v2654
          %v2747 = vpack.c.b16 %v2657, %v2656
          %v2748 = vpack.c.b16 %v2659, %v2658
          %v2749 = vpack.c.b16 %v2661, %v2660
          %v2750 = vpack.c.b16 %v2663, %v2662
          %v2751 = vpack.c.b16 %v2665, %v2664
          %v2752 = vpack.c.b16 %v2667, %v2666
          %v2753 = vpack.c.b16 %v2669, %v2668
          %v2754 = vpack.c.b16 %v2671, %v2670
          %v2755 = vpack.c.b16 %v2673, %v2672
          %v2756 = vpack.c.b16 %v2675, %v2674
          %v2757 = vpack.c.b16 %v2677, %v2676
          %v2758 = vpack.c.b16 %v2679, %v2678
          %v2759 = vpack.c.b16 %v2681, %v2680
          %v2760 = vpack.c.b16 %v2683, %v2682
          %v2761 = vpack.c.b16 %v2685, %v2684
          %v2762 = vpack.c.b16 %v2687, %v2686
          %v2763 = vpack.c.b16 %v2689, %v2688
          %v2764 = vpack.c.b16 %v2691, %v2690
          %v2765 = vpack.c.b16 %v2693, %v2692
          %v2766 = vpack.c.b16 %v2695, %v2694
          %v2767 = vpack.c.b16 %v2697, %v2696
          %v2768 = vpack.c.b16 %v2699, %v2698
          %v2769 = vpack.c.b16 %v2701, %v2700
          %v2770 = vpack.c.b16 %v2703, %v2702
          %v2771 = vpack.c.b16 %v2705, %v2704
          %v2772 = vpack.c.b16 %v2707, %v2706
          %v2773 = vpack.c.b16 %v2709, %v2708
          %2838 = vmatprep.subr.bf16.mxu0 0
          %2839 = vmatpush1.bf16.msra.mxu0 %v2710
          %2840 = vmatprep.subr.bf16.mxu0 0
          %2841 = vmatpush1.bf16.msra.mxu0 %v2711
          %2842 = vmatprep.subr.bf16.mxu0 0
          %2843 = vmatpush1.bf16.msra.mxu0 %v2712
          %2844 = vmatprep.subr.bf16.mxu0 0
          %2845 = vmatpush1.bf16.msra.mxu0 %v2713
          %2846 = vmatprep.subr.bf16.mxu0 0
          %2847 = vmatpush1.bf16.msra.mxu0 %v2714
          %2848 = vmatprep.subr.bf16.mxu0 0
          %2849 = vmatpush1.bf16.msra.mxu0 %v2715
          %2850 = vmatprep.subr.bf16.mxu0 0
          %2851 = vmatpush1.bf16.msra.mxu0 %v2716
          %2852 = vmatprep.subr.bf16.mxu0 0
          %2853 = vmatpush1.bf16.msra.mxu0 %v2717
          %2854 = vmatprep.subr.bf16.mxu0 0
          %2855 = vmatpush1.bf16.msra.mxu0 %v2718
          %2856 = vmatprep.subr.bf16.mxu0 0
          %2857 = vmatpush1.bf16.msra.mxu0 %v2719
          %2858 = vmatprep.subr.bf16.mxu0 0
          %2859 = vmatpush1.bf16.msra.mxu0 %v2720
          %2860 = vmatprep.subr.bf16.mxu0 0
          %2861 = vmatpush1.bf16.msra.mxu0 %v2721
          %2862 = vmatprep.subr.bf16.mxu0 0
          %2863 = vmatpush1.bf16.msra.mxu0 %v2722
          %2864 = vmatprep.subr.bf16.mxu0 0
          %2865 = vmatpush1.bf16.msra.mxu0 %v2723
          %2866 = vmatprep.subr.bf16.mxu0 0
          %2867 = vmatpush1.bf16.msra.mxu0 %v2724
          %2868 = vmatprep.subr.bf16.mxu0 0
          %2869 = vmatpush1.bf16.msra.mxu0 %v2725
          %2870 = vmatprep.mubr.bf16.mxu0 %v2312
          %2871 = vmatmul.mubr.bf16.gmra.mrb[0].mxu0 %v2311
          %v2872 = vpop.f32.mrb[0].mxu0
          %v2873 = vadd.f32 %v2452, %v2872
          %v2874 = vpop.f32.mrb[0].mxu0
          %v2875 = vpop.f32.mrb[0].mxu0
          %v2876 = vpop.f32.mrb[0].mxu0
          %2877 = vdwg.mxu0
          %2878 = vmatprep.subr.bf16.mxu0 0
          %2879 = vmatpush1.bf16.msra.mxu0 %v2726
          %2880 = vmatprep.subr.bf16.mxu0 0
          %2881 = vmatpush1.bf16.msra.mxu0 %v2727
          %2882 = vmatprep.subr.bf16.mxu0 0
          %2883 = vmatpush1.bf16.msra.mxu0 %v2728
          %2884 = vmatprep.subr.bf16.mxu0 0
          %2885 = vmatpush1.bf16.msra.mxu0 %v2729
          %2886 = vmatprep.subr.bf16.mxu0 0
          %2887 = vmatpush1.bf16.msra.mxu0 %v2730
          %2888 = vmatprep.subr.bf16.mxu0 0
          %2889 = vmatpush1.bf16.msra.mxu0 %v2731
          %2890 = vmatprep.subr.bf16.mxu0 0
          %2891 = vmatpush1.bf16.msra.mxu0 %v2732
          %2892 = vmatprep.subr.bf16.mxu0 0
          %2893 = vmatpush1.bf16.msra.mxu0 %v2733
          %2894 = vmatprep.subr.bf16.mxu0 0
          %2895 = vmatpush1.bf16.msra.mxu0 %v2734
          %2896 = vmatprep.subr.bf16.mxu0 0
          %2897 = vmatpush1.bf16.msra.mxu0 %v2735
          %2898 = vmatprep.subr.bf16.mxu0 0
          %2899 = vmatpush1.bf16.msra.mxu0 %v2736
          %2900 = vmatprep.subr.bf16.mxu0 0
          %2901 = vmatpush1.bf16.msra.mxu0 %v2737
          %2902 = vmatprep.subr.bf16.mxu0 0
          %2903 = vmatpush1.bf16.msra.mxu0 %v2738
          %2904 = vmatprep.subr.bf16.mxu0 0
          %2905 = vmatpush1.bf16.msra.mxu0 %v2739
          %2906 = vmatprep.subr.bf16.mxu0 0
          %2907 = vmatpush1.bf16.msra.mxu0 %v2740
          %2908 = vmatprep.subr.bf16.mxu0 0
          %2909 = vmatpush1.bf16.msra.mxu0 %v2741
          %2910 = vmatprep.mubr.bf16.mxu0 %v2314
          %2911 = vmatmul.mubr.bf16.gmra.mrb[0].mxu0 %v2313
          %v2912 = vpop.f32.mrb[0].mxu0
          %v2913 = vadd.f32 %v2873, %v2912
          %v2914 = vpop.f32.mrb[0].mxu0
          %v2915 = vpop.f32.mrb[0].mxu0
          %v2916 = vpop.f32.mrb[0].mxu0
          %2917 = vdwg.mxu0
          %2918 = vmatprep.subr.bf16.mxu0 0
          %2919 = vmatpush1.bf16.msra.mxu0 %v2742
          %2920 = vmatprep.subr.bf16.mxu0 0
          %2921 = vmatpush1.bf16.msra.mxu0 %v2743
          %2922 = vmatprep.subr.bf16.mxu0 0
          %2923 = vmatpush1.bf16.msra.mxu0 %v2744
          %2924 = vmatprep.subr.bf16.mxu0 0
          %2925 = vmatpush1.bf16.msra.mxu0 %v2745
          %2926 = vmatprep.subr.bf16.mxu0 0
          %2927 = vmatpush1.bf16.msra.mxu0 %v2746
          %2928 = vmatprep.subr.bf16.mxu0 0
          %2929 = vmatpush1.bf16.msra.mxu0 %v2747
          %2930 = vmatprep.subr.bf16.mxu0 0
          %2931 = vmatpush1.bf16.msra.mxu0 %v2748
          %2932 = vmatprep.subr.bf16.mxu0 0
          %2933 = vmatpush1.bf16.msra.mxu0 %v2749
          %2934 = vmatprep.subr.bf16.mxu0 0
          %2935 = vmatpush1.bf16.msra.mxu0 %v2750
          %2936 = vmatprep.subr.bf16.mxu0 0
          %2937 = vmatpush1.bf16.msra.mxu0 %v2751
          %2938 = vmatprep.subr.bf16.mxu0 0
          %2939 = vmatpush1.bf16.msra.mxu0 %v2752
          %2940 = vmatprep.subr.bf16.mxu0 0
          %2941 = vmatpush1.bf16.msra.mxu0 %v2753
          %2942 = vmatprep.subr.bf16.mxu0 0
          %2943 = vmatpush1.bf16.msra.mxu0 %v2754
          %2944 = vmatprep.subr.bf16.mxu0 0
          %2945 = vmatpush1.bf16.msra.mxu0 %v2755
          %2946 = vmatprep.subr.bf16.mxu0 0
          %2947 = vmatpush1.bf16.msra.mxu0 %v2756
          %2948 = vmatprep.subr.bf16.mxu0 0
          %2949 = vmatpush1.bf16.msra.mxu0 %v2757
          %2950 = vmatprep.mubr.bf16.mxu0 %v2316
          %2951 = vmatmul.mubr.bf16.gmra.mrb[0].mxu0 %v2315
          %v2952 = vpop.f32.mrb[0].mxu0
          %v2953 = vadd.f32 %v2913, %v2952
          %v2954 = vpop.f32.mrb[0].mxu0
          %v2955 = vpop.f32.mrb[0].mxu0
          %v2956 = vpop.f32.mrb[0].mxu0
          %2957 = vdwg.mxu0
          %2958 = vmatprep.subr.bf16.mxu0 0
          %2959 = vmatpush1.bf16.msra.mxu0 %v2758
          %2960 = vmatprep.subr.bf16.mxu0 0
          %2961 = vmatpush1.bf16.msra.mxu0 %v2759
          %2962 = vmatprep.subr.bf16.mxu0 0
          %2963 = vmatpush1.bf16.msra.mxu0 %v2760
          %2964 = vmatprep.subr.bf16.mxu0 0
          %2965 = vmatpush1.bf16.msra.mxu0 %v2761
          %2966 = vmatprep.subr.bf16.mxu0 0
          %2967 = vmatpush1.bf16.msra.mxu0 %v2762
          %2968 = vmatprep.subr.bf16.mxu0 0
          %2969 = vmatpush1.bf16.msra.mxu0 %v2763
          %2970 = vmatprep.subr.bf16.mxu0 0
          %2971 = vmatpush1.bf16.msra.mxu0 %v2764
          %2972 = vmatprep.subr.bf16.mxu0 0
          %2973 = vmatpush1.bf16.msra.mxu0 %v2765
          %2974 = vmatprep.subr.bf16.mxu0 0
          %2975 = vmatpush1.bf16.msra.mxu0 %v2766
          %2976 = vmatprep.subr.bf16.mxu0 0
          %2977 = vmatpush1.bf16.msra.mxu0 %v2767
          %2978 = vmatprep.subr.bf16.mxu0 0
          %2979 = vmatpush1.bf16.msra.mxu0 %v2768
          %2980 = vmatprep.subr.bf16.mxu0 0
          %2981 = vmatpush1.bf16.msra.mxu0 %v2769
          %2982 = vmatprep.subr.bf16.mxu0 0
          %2983 = vmatpush1.bf16.msra.mxu0 %v2770
          %2984 = vmatprep.subr.bf16.mxu0 0
          %2985 = vmatpush1.bf16.msra.mxu0 %v2771
          %2986 = vmatprep.subr.bf16.mxu0 0
          %2987 = vmatpush1.bf16.msra.mxu0 %v2772
          %2988 = vmatprep.subr.bf16.mxu0 0
          %2989 = vmatpush1.bf16.msra.mxu0 %v2773
          %2990 = vmatprep.mubr.bf16.mxu0 %v2318
          %2991 = vmatmul.mubr.bf16.gmra.mrb[0].mxu0 %v2317
          %v2992 = vpop.f32.mrb[0].mxu0
          %v2993 = vadd.f32 %v2953, %v2992
          %v2994 = vpop.f32.mrb[0].mxu0
          %v2995 = vpop.f32.mrb[0].mxu0
          %v2996 = vpop.f32.mrb[0].mxu0
          %2997 = vdwg.mxu0
          %2998 = vst [vmem:[#allocation12] sm:$0xff] %v2993
        $region68: #{tpu_custom_call.1} parent=39 // pred_fallthru
          _
        // Predicated region
        $region69: #{tpu_custom_call.1} parent=39 // pred_check
          %p2999 = pneg %p171
        $region70: #{tpu_custom_call.1} parent=39 // pred_check_branch
          %3001 = sbr.rel (%p2999) target = $region72
        $region71: #{tpu_custom_call.1} parent=39 // pred_region
          %s3003 = ssub.s32 128, 128
          %3004 = vsyncadd [#allocation5], %s3003
          %s3005 = smul.addr %s28, 128
          %s3006 = scalar_lea.hbm %s5, %s3005
          %s3008 = sshll.u32 [#allocation12], 4
          %s3009 = int_to_ptr.vmem [resolvable:$true] %s3008
          %3011 = dma.vmem_to_hbm [thread:$0]  %s3009, 128, %s3006, [#allocation5]
        $region72: #{tpu_custom_call.1} parent=39 // pred_fallthru
          _
        // Predicated region
        $region73: #{tpu_custom_call.1} parent=39 // pred_check
          %p3012 = pneg %p171
        $region74: #{tpu_custom_call.1} parent=39 // pred_check_branch
          %3014 = sbr.rel (%p3012) target = $region76
        $region75: #{tpu_custom_call.1} parent=39 // pred_region
          %3015 = dma.done [#allocation5], 128
        $region76: #{tpu_custom_call.1} parent=39 // pred_fallthru
          _
      $region40: #{tpu_custom_call.1} parent=5 // pred_fallthru
        _
      %p3016 = scmp.le.s32.totalorder 2, %s19
      // Predicated region
      $region77: #{tpu_custom_call.1} parent=5 // pred_check
        %p3017 = pneg %p3016
      $region78: #{tpu_custom_call.1} parent=5 // pred_check_branch
        %3019 = sbr.rel (%p3017) target = $region80
      $region79: #{tpu_custom_call.1} parent=5 // pred_region
        %s3020 = ssub.s32 %s19, 2
      $region80: #{tpu_custom_call.1} parent=5 // pred_fallthru
        _
    $region6: #{tpu_custom_call.1} parent=1 // loop_footer
      %s23 = sadd.s32 1, %s19
    $region7: #{tpu_custom_call.1} parent=1 // loop_footer_branch
      %18 = sbr.rel target = $region3
    $region8: #{tpu_custom_call.1} parent=1 // loop_exit
      _
    %3021 = vsyncpa [#allocation4], 1
    %s3022 = scalar_lea.sflag [#allocation4], 1
    %3023 = vsyncpa %s3022, 1
    %3024 = vsyncpa [#allocation7], 1
    %s3025 = scalar_lea.sflag [#allocation7], 1
    %3026 = vsyncpa %s3025, 1
    %3027 = vsyncpa [#allocation10], 1
    %3028 = vsyncpa [#allocation5], 1
    %s3029 = scalar_lea.sflag [#allocation5], 1
    %3030 = vsyncpa %s3029, 1

</llo_original>
